<compile_context>
chip_gen: v5e
topology: v5e:2x2
jax: 0.10.0
libtpu: 0.0.40
codegen_flags: <defaults>
</compile_context>

<pallas_src>
import functools
import math

import jax
import jax.numpy as jnp
from jax.experimental import pallas as pl
from jax.experimental.pallas import tpu as pltpu

EPS = 1e-5  # PyTorch nn.LayerNorm default eps


def _encoder_kernel(num_heads, head_ch, L, C, Ce, ce_chunk,
                    x_ref, wqkv_ref, wo_ref, w1_ref, w2_ref, pc_ref, pe_ref,
                    out_ref):
    x = x_ref[0]                          # (L, C) f32, one batch element
    pc = pc_ref[...]                      # (11, C) packed per-channel params
    pe = pe_ref[...]                      # (5, Ce) packed expanded params
    cdt = wqkv_ref.dtype                  # MXU input dtype (bf16)

    def ln(z, gi, bi):                    # f32 LayerNorm over channels
        mu = jnp.mean(z, axis=-1, keepdims=True)
        var = jnp.mean((z - mu) ** 2, axis=-1, keepdims=True)
        return (z - mu) * jax.lax.rsqrt(var + EPS) * pc[gi:gi + 1, :] + pc[bi:bi + 1, :]

    # ---- LN1 + fused QKV projection: one (L, C) x (C, 3C) matmul ----
    h = ln(x, 0, 1)
    qkv = jnp.dot(h.astype(cdt), wqkv_ref[...], preferred_element_type=jnp.float32)
    q = ln(qkv[:, 0:C], 2, 3)             # 1/sqrt(head_ch) pre-folded into lnq g/b
    k = ln(qkv[:, C:2 * C], 4, 5)
    v = ln(qkv[:, 2 * C:3 * C], 6, 7)

    # ---- attention: short static unroll over heads (static lane slices),
    #      head outputs gathered into one (L, C) buffer, single wo matmul ----
    head_outs = []
    for hd in range(num_heads):
        c0 = hd * head_ch
        qh = q[:, c0:c0 + head_ch].astype(cdt)
        kh = k[:, c0:c0 + head_ch].astype(cdt)
        vh = v[:, c0:c0 + head_ch].astype(cdt)
        dots = jax.lax.dot_general(qh, kh, (((1,), (1,)), ((), ())),
                                   preferred_element_type=jnp.float32)
        dots = dots - jnp.max(dots, axis=-1, keepdims=True)
        p = jnp.exp(dots)
        p = p * pl.reciprocal(jnp.sum(p, axis=-1, keepdims=True), approx=True)
        head_outs.append(jnp.dot(p.astype(cdt), vh,
                                 preferred_element_type=jnp.float32))
    attn_out = jnp.concatenate(head_outs, axis=-1)            # (L, C)
    mhsa = jnp.dot(attn_out.astype(cdt), wo_ref[...],
                   preferred_element_type=jnp.float32)
    y = mhsa + x                                              # residual 1 (in regs)

    # ---- LN2 + MixFFN, chunked along Ce to cap VMEM/vreg pressure ----
    z = ln(y, 8, 9).astype(cdt)
    pos = jax.lax.broadcasted_iota(jnp.int32, (L, 1), 0)
    not_first = (pos != 0).astype(jnp.float32)                # (L, 1) masks
    not_last = (pos != L - 1).astype(jnp.float32)

    ffn = jnp.zeros((L, C), jnp.float32)
    for cs in range(0, Ce, ce_chunk):                         # static chunk loop
        ce = cs + ce_chunk
        # linear1 (k=1 conv) with the depthwise group-expansion folded in
        h1e = (jnp.dot(z, w1_ref[:, cs:ce], preferred_element_type=jnp.float32)
               + pe[0:1, cs:ce])
        # depthwise k=3 'same' conv along L: non-negative sublane rolls (XLU)
        # + tap scaling (VPU); wrapped rows masked to zero at sequence ends.
        prev = pltpu.roll(h1e, 1, axis=0) * not_first          # row i <- row i-1
        nxt = pltpu.roll(h1e, L - 1, axis=0) * not_last        # row i <- row i+1
        conv = (prev * pe[1:2, cs:ce] + h1e * pe[2:3, cs:ce]
                + nxt * pe[3:4, cs:ce] + pe[4:5, cs:ce])
        g = 0.5 * conv * (1.0 + jax.lax.erf(conv * (2.0 ** -0.5)))  # exact-erf GELU
        ffn = ffn + jnp.dot(g.astype(cdt), w2_ref[cs:ce, :],
                            preferred_element_type=jnp.float32)

    out_ref[0] = (ffn + pc[10:11, :] + y).astype(out_ref.dtype)    # residual 2


def _invariant_spec(shape):
    """Grid-invariant operand: fetched once; request single-buffering to halve
    weight VMEM (falls back to default double-buffering if this JAX build does
    not accept pipeline_mode)."""
    idx = lambda i: (0, 0)
    try:
        return pl.BlockSpec(shape, idx, pipeline_mode=pl.Buffered(1))
    except Exception:
        return pl.BlockSpec(shape, idx)


def vit_encoder_mixffn(x, params, num_heads, expansion):
    B, L, C = x.shape
    Ce = C * expansion
    head_ch = C // num_heads
    f32 = jnp.float32
    wdt = jnp.bfloat16                    # MXU weight / input dtype
    scale = 1.0 / (head_ch ** 0.5)

    # fused QKV projection weight (C, 3C) and output projection (C, C)
    wqkvT = jnp.concatenate(
        [params["wq"].T, params["wk"].T, params["wv"].T], axis=1).astype(wdt)
    woT = params["wo"].T.astype(wdt)

    # fold the depthwise-group expansion (out channel o reads in channel
    # o // expansion) into linear1 -> h1e = z @ w1eT + b1e is already (L, Ce)
    expand = (jnp.arange(Ce)[None, :] // expansion
              == jnp.arange(C)[:, None]).astype(f32)              # (C, Ce)
    w1eT = (params["w1"].T.astype(f32) @ expand).astype(wdt)      # (C, Ce)
    b1e = jnp.repeat(params["b1"].astype(f32), expansion)         # (Ce,)
    w2T = params["w2"].T.astype(wdt)                              # (Ce, C)

    wc = params["wc"].astype(f32)                                 # (Ce, 1, 3)
    # pack tiny per-channel vectors: 2 operands instead of 14.
    # The attention 1/sqrt(head_ch) scale is folded into the lnq gamma/beta.
    pc = jnp.stack([params["ln1_g"], params["ln1_b"],
                    params["lnq_g"] * scale, params["lnq_b"] * scale,
                    params["lnk_g"], params["lnk_b"],
                    params["lnv_g"], params["lnv_b"],
                    params["ln2_g"], params["ln2_b"],
                    params["b2"]]).astype(f32)                    # (11, C)
    pe = jnp.stack([b1e, wc[:, 0, 0], wc[:, 0, 1], wc[:, 0, 2],
                    params["bc"].astype(f32)])                    # (5, Ce)

    # Ce chunk width for the MixFFN (full Ce when small; <=512-wide slabs,
    # always a divisor of Ce, multiple of 128 at real ViT sizes).
    ce_chunk = Ce if Ce <= 512 else math.gcd(Ce, 512)

    xf = x.astype(f32)

    kernel = functools.partial(_encoder_kernel, num_heads, head_ch, L, C, Ce, ce_chunk)

    out = pl.pallas_call(
        kernel,
        out_shape=jax.ShapeDtypeStruct((B, L, C), x.dtype),
        grid=(B,),
        in_specs=[
            pl.BlockSpec((1, L, C), lambda i: (i, 0, 0)),          # x: one image/step
            _invariant_spec((C, 3 * C)),                           # wqkv
            _invariant_spec((C, C)),                               # wo
            _invariant_spec((C, Ce)),                              # w1 (expanded)
            _invariant_spec((Ce, C)),                              # w2
            _invariant_spec((11, C)),                              # packed per-C params
            _invariant_spec((5, Ce)),                              # packed per-Ce params
        ],
        out_specs=pl.BlockSpec((1, L, C), lambda i: (i, 0, 0)),
        compiler_params=pltpu.CompilerParams(
            dimension_semantics=("parallel",),
            vmem_limit_bytes=64 * 1024 * 1024),
    )(xf, wqkvT, woT, w1eT, w2T, pc, pe)
    return out


# ---------------- pure-JAX reference (mirrors PyTorch semantics) ----------------
def reference(x, params, num_heads, expansion):
    B, L, C = x.shape
    Ce = C * expansion
    hc = C // num_heads

    def ln(z, g, b):
        mu = z.mean(-1, keepdims=True)
        var = ((z - mu) ** 2).mean(-1, keepdims=True)
        return (z - mu) / jnp.sqrt(var + EPS) * g + b

    h = ln(x, params["ln1_g"], params["ln1_b"])
    q = ln(h @ params["wq"].T, params["lnq_g"], params["lnq_b"])
    k = ln(h @ params["wk"].T, params["lnk_g"], params["lnk_b"])
    v = ln(h @ params["wv"].T, params["lnv_g"], params["lnv_b"])

    def split(t):
        return t.reshape(B, L, num_heads, hc).transpose(0, 2, 1, 3)

    qh, kh, vh = split(q), split(k), split(v)
    dots = jnp.einsum("bhld,bhmd->bhlm", qh, kh) / (hc ** 0.5)
    attn = jax.nn.softmax(dots, axis=-1)
    out = jnp.einsum("bhlm,bhmd->bhld", attn, vh).transpose(0, 2, 1, 3).reshape(B, L, C)
    mhsa = out @ params["wo"].T
    y = mhsa + x

    z = ln(y, params["ln2_g"], params["ln2_b"])
    h1 = z @ params["w1"].T + params["b1"]
    pad = jnp.pad(h1, ((0, 0), (1, 1), (0, 0)))
    gathered = pad[:, :, jnp.arange(Ce) // expansion]             # (B, L+2, Ce)
    wc = params["wc"]
    conv = sum(gathered[:, t:t + L, :] * wc[:, 0, t][None, None, :] for t in range(3))
    conv = conv + params["bc"]
    g = 0.5 * conv * (1.0 + jax.lax.erf(conv * (2.0 ** -0.5)))
    ffn = g @ params["w2"].T + params["b2"]
    return ffn + y


if __name__ == "__main__":
    # emb_dim=32, head_num=4, expantion_ratio=2, reduction_ratio=1; the
    # kernel_size arg is unused by the PyTorch module (depthwise conv is k=3).
    B, L, C = 4, 16, 32
    num_heads = 4
    expansion = 2
    Ce = C * expansion

    key = jax.random.PRNGKey(0)
    ks = jax.random.split(key, 12)

    def nrm(k, shape, s=0.05):
        return jax.random.normal(k, shape, jnp.float32) * s

    params = {
        "ln1_g": jnp.ones((C,), jnp.float32), "ln1_b": jnp.zeros((C,), jnp.float32),
        "wq": nrm(ks[0], (C, C)), "wk": nrm(ks[1], (C, C)), "wv": nrm(ks[2], (C, C)),
        "lnq_g": jnp.ones((C,), jnp.float32), "lnq_b": jnp.zeros((C,), jnp.float32),
        "lnk_g": jnp.ones((C,), jnp.float32), "lnk_b": jnp.zeros((C,), jnp.float32),
        "lnv_g": jnp.ones((C,), jnp.float32), "lnv_b": jnp.zeros((C,), jnp.float32),
        "wo": nrm(ks[3], (C, C)),
        "ln2_g": jnp.ones((C,), jnp.float32), "ln2_b": jnp.zeros((C,), jnp.float32),
        "w1": nrm(ks[4], (C, C)), "b1": nrm(ks[5], (C,)),          # Conv1d(C,C,1)
        "wc": nrm(ks[6], (Ce, 1, 3)), "bc": nrm(ks[7], (Ce,)),     # depthwise k=3
        "w2": nrm(ks[8], (C, Ce)), "b2": nrm(ks[9], (C,)),         # Conv1d(Ce,C,1)
    }
    x = jax.random.normal(ks[10], (B, L, C), jnp.float32)

    out = jax.block_until_ready(vit_encoder_mixffn(x, params, num_heads, expansion))
    ref = reference(x, params, num_heads, expansion)

    assert out.shape == (B, L, C)
    err = float(jnp.max(jnp.abs(out - ref)))
    if err < 5e-2:
        print("KERNEL_OK")
    else:
        print(f"MISMATCH max_abs_err={err}")
</pallas_src>

<mosaic_0001>
module attributes {stable_mosaic.version = 11 : i64} {
  func.func @_encoder_kernel(%arg0: i32, %arg1: memref<1x16x32xf32, #tpu.memory_space<vmem>>, %arg2: memref<32x96xbf16, #tpu.memory_space<vmem>>, %arg3: memref<32x32xbf16, #tpu.memory_space<vmem>>, %arg4: memref<32x64xbf16, #tpu.memory_space<vmem>>, %arg5: memref<64x32xbf16, #tpu.memory_space<vmem>>, %arg6: memref<11x32xf32, #tpu.memory_space<vmem>>, %arg7: memref<5x64xf32, #tpu.memory_space<vmem>>, %arg8: memref<1x16x32xf32, #tpu.memory_space<vmem>>) attributes {dimension_semantics = [#tpu.dimension_semantics<parallel>], iteration_bounds = array<i64: 4>, scalar_prefetch = 0 : i64, scratch_operands = 0 : i64, tpu.core_type = #tpu.core_type<tc>, window_params = [{transform_indices = @transform_0, window_bounds = array<i64: 1, 16, 32>}, {pipeline_mode = #tpu.pipeline_mode<synchronous>, transform_indices = @transform_1, window_bounds = array<i64: 32, 96>}, {pipeline_mode = #tpu.pipeline_mode<synchronous>, transform_indices = @transform_2, window_bounds = array<i64: 32, 32>}, {pipeline_mode = #tpu.pipeline_mode<synchronous>, transform_indices = @transform_3, window_bounds = array<i64: 32, 64>}, {pipeline_mode = #tpu.pipeline_mode<synchronous>, transform_indices = @transform_4, window_bounds = array<i64: 64, 32>}, {pipeline_mode = #tpu.pipeline_mode<synchronous>, transform_indices = @transform_5, window_bounds = array<i64: 11, 32>}, {pipeline_mode = #tpu.pipeline_mode<synchronous>, transform_indices = @transform_6, window_bounds = array<i64: 5, 64>}, {transform_indices = @transform_7, window_bounds = array<i64: 1, 16, 32>}]} {
    %c0 = arith.constant 0 : index
    %c0_0 = arith.constant 0 : index
    %c0_1 = arith.constant 0 : index
    %0 = vector.load %arg1[%c0, %c0_0, %c0_1] : memref<1x16x32xf32, #tpu.memory_space<vmem>>, vector<1x16x32xf32>
    %1 = vector.shape_cast %0 : vector<1x16x32xf32> to vector<16x32xf32>
    %c0_2 = arith.constant 0 : index
    %c0_3 = arith.constant 0 : index
    %2 = vector.load %arg6[%c0_2, %c0_3] : memref<11x32xf32, #tpu.memory_space<vmem>>, vector<11x32xf32>
    %c0_4 = arith.constant 0 : index
    %c0_5 = arith.constant 0 : index
    %3 = vector.load %arg7[%c0_4, %c0_5] : memref<5x64xf32, #tpu.memory_space<vmem>>, vector<5x64xf32>
    %cst = arith.constant dense<0.000000e+00> : vector<16xf32>
    %4 = vector.multi_reduction <add>, %1, %cst [1] : vector<16x32xf32> to vector<16xf32>
    %5 = vector.shape_cast %4 : vector<16xf32> to vector<16x1xf32>
    %cst_6 = arith.constant 3.200000e+01 : f32
    %6 = vector.broadcast %cst_6 : f32 to vector<16x1xf32>
    %7 = arith.divf %5, %6 : vector<16x1xf32>
    %8 = vector.broadcast %7 : vector<16x1xf32> to vector<16x32xf32>
    %9 = arith.subf %1, %8 : vector<16x32xf32>
    %10 = arith.mulf %9, %9 : vector<16x32xf32>
    %cst_7 = arith.constant dense<0.000000e+00> : vector<16xf32>
    %11 = vector.multi_reduction <add>, %10, %cst_7 [1] : vector<16x32xf32> to vector<16xf32>
    %12 = vector.shape_cast %11 : vector<16xf32> to vector<16x1xf32>
    %cst_8 = arith.constant 3.200000e+01 : f32
    %13 = vector.broadcast %cst_8 : f32 to vector<16x1xf32>
    %14 = arith.divf %12, %13 : vector<16x1xf32>
    %15 = vector.broadcast %7 : vector<16x1xf32> to vector<16x32xf32>
    %16 = arith.subf %1, %15 : vector<16x32xf32>
    %cst_9 = arith.constant 9.99999974E-6 : f32
    %17 = vector.broadcast %cst_9 : f32 to vector<16x1xf32>
    %18 = arith.addf %14, %17 : vector<16x1xf32>
    %19 = math.rsqrt %18 : vector<16x1xf32>
    %20 = vector.broadcast %19 : vector<16x1xf32> to vector<16x32xf32>
    %21 = arith.mulf %16, %20 : vector<16x32xf32>
    %22 = vector.extract_strided_slice %2 {offsets = [0, 0], sizes = [1, 32], strides = [1, 1]} : vector<11x32xf32> to vector<1x32xf32>
    %23 = vector.broadcast %22 : vector<1x32xf32> to vector<16x32xf32>
    %24 = arith.mulf %21, %23 : vector<16x32xf32>
    %25 = vector.extract_strided_slice %2 {offsets = [1, 0], sizes = [1, 32], strides = [1, 1]} : vector<11x32xf32> to vector<1x32xf32>
    %26 = vector.broadcast %25 : vector<1x32xf32> to vector<16x32xf32>
    %27 = arith.addf %24, %26 : vector<16x32xf32>
    %28 = arith.truncf %27 : vector<16x32xf32> to vector<16x32xbf16>
    %c0_10 = arith.constant 0 : index
    %c0_11 = arith.constant 0 : index
    %29 = vector.load %arg2[%c0_10, %c0_11] : memref<32x96xbf16, #tpu.memory_space<vmem>>, vector<32x96xbf16>
    %cst_12 = arith.constant dense<0.000000e+00> : vector<16x96xf32>
    %30 = tpu.matmul %28, %29, %cst_12 {dimension_numbers = #tpu.dot_dimension_numbers<[1], [0], [0], [1], [0, 0, 1, 1], [], []>} : vector<16x32xbf16>, vector<32x96xbf16>, vector<16x96xf32> -> vector<16x96xf32>
    %31 = vector.extract_strided_slice %30 {offsets = [0, 0], sizes = [16, 32], strides = [1, 1]} : vector<16x96xf32> to vector<16x32xf32>
    %cst_13 = arith.constant dense<0.000000e+00> : vector<16xf32>
    %32 = vector.multi_reduction <add>, %31, %cst_13 [1] : vector<16x32xf32> to vector<16xf32>
    %33 = vector.shape_cast %32 : vector<16xf32> to vector<16x1xf32>
    %cst_14 = arith.constant 3.200000e+01 : f32
    %34 = vector.broadcast %cst_14 : f32 to vector<16x1xf32>
    %35 = arith.divf %33, %34 : vector<16x1xf32>
    %36 = vector.broadcast %35 : vector<16x1xf32> to vector<16x32xf32>
    %37 = arith.subf %31, %36 : vector<16x32xf32>
    %38 = arith.mulf %37, %37 : vector<16x32xf32>
    %cst_15 = arith.constant dense<0.000000e+00> : vector<16xf32>
    %39 = vector.multi_reduction <add>, %38, %cst_15 [1] : vector<16x32xf32> to vector<16xf32>
    %40 = vector.shape_cast %39 : vector<16xf32> to vector<16x1xf32>
    %cst_16 = arith.constant 3.200000e+01 : f32
    %41 = vector.broadcast %cst_16 : f32 to vector<16x1xf32>
    %42 = arith.divf %40, %41 : vector<16x1xf32>
    %43 = vector.broadcast %35 : vector<16x1xf32> to vector<16x32xf32>
    %44 = arith.subf %31, %43 : vector<16x32xf32>
    %cst_17 = arith.constant 9.99999974E-6 : f32
    %45 = vector.broadcast %cst_17 : f32 to vector<16x1xf32>
    %46 = arith.addf %42, %45 : vector<16x1xf32>
    %47 = math.rsqrt %46 : vector<16x1xf32>
    %48 = vector.broadcast %47 : vector<16x1xf32> to vector<16x32xf32>
    %49 = arith.mulf %44, %48 : vector<16x32xf32>
    %50 = vector.extract_strided_slice %2 {offsets = [2, 0], sizes = [1, 32], strides = [1, 1]} : vector<11x32xf32> to vector<1x32xf32>
    %51 = vector.broadcast %50 : vector<1x32xf32> to vector<16x32xf32>
    %52 = arith.mulf %49, %51 : vector<16x32xf32>
    %53 = vector.extract_strided_slice %2 {offsets = [3, 0], sizes = [1, 32], strides = [1, 1]} : vector<11x32xf32> to vector<1x32xf32>
    %54 = vector.broadcast %53 : vector<1x32xf32> to vector<16x32xf32>
    %55 = arith.addf %52, %54 : vector<16x32xf32>
    %56 = vector.extract_strided_slice %30 {offsets = [0, 32], sizes = [16, 32], strides = [1, 1]} : vector<16x96xf32> to vector<16x32xf32>
    %cst_18 = arith.constant dense<0.000000e+00> : vector<16xf32>
    %57 = vector.multi_reduction <add>, %56, %cst_18 [1] : vector<16x32xf32> to vector<16xf32>
    %58 = vector.shape_cast %57 : vector<16xf32> to vector<16x1xf32>
    %cst_19 = arith.constant 3.200000e+01 : f32
    %59 = vector.broadcast %cst_19 : f32 to vector<16x1xf32>
    %60 = arith.divf %58, %59 : vector<16x1xf32>
    %61 = vector.broadcast %60 : vector<16x1xf32> to vector<16x32xf32>
    %62 = arith.subf %56, %61 : vector<16x32xf32>
    %63 = arith.mulf %62, %62 : vector<16x32xf32>
    %cst_20 = arith.constant dense<0.000000e+00> : vector<16xf32>
    %64 = vector.multi_reduction <add>, %63, %cst_20 [1] : vector<16x32xf32> to vector<16xf32>
    %65 = vector.shape_cast %64 : vector<16xf32> to vector<16x1xf32>
    %cst_21 = arith.constant 3.200000e+01 : f32
    %66 = vector.broadcast %cst_21 : f32 to vector<16x1xf32>
    %67 = arith.divf %65, %66 : vector<16x1xf32>
    %68 = vector.broadcast %60 : vector<16x1xf32> to vector<16x32xf32>
    %69 = arith.subf %56, %68 : vector<16x32xf32>
    %cst_22 = arith.constant 9.99999974E-6 : f32
    %70 = vector.broadcast %cst_22 : f32 to vector<16x1xf32>
    %71 = arith.addf %67, %70 : vector<16x1xf32>
    %72 = math.rsqrt %71 : vector<16x1xf32>
    %73 = vector.broadcast %72 : vector<16x1xf32> to vector<16x32xf32>
    %74 = arith.mulf %69, %73 : vector<16x32xf32>
    %75 = vector.extract_strided_slice %2 {offsets = [4, 0], sizes = [1, 32], strides = [1, 1]} : vector<11x32xf32> to vector<1x32xf32>
    %76 = vector.broadcast %75 : vector<1x32xf32> to vector<16x32xf32>
    %77 = arith.mulf %74, %76 : vector<16x32xf32>
    %78 = vector.extract_strided_slice %2 {offsets = [5, 0], sizes = [1, 32], strides = [1, 1]} : vector<11x32xf32> to vector<1x32xf32>
    %79 = vector.broadcast %78 : vector<1x32xf32> to vector<16x32xf32>
    %80 = arith.addf %77, %79 : vector<16x32xf32>
    %81 = vector.extract_strided_slice %30 {offsets = [0, 64], sizes = [16, 32], strides = [1, 1]} : vector<16x96xf32> to vector<16x32xf32>
    %cst_23 = arith.constant dense<0.000000e+00> : vector<16xf32>
    %82 = vector.multi_reduction <add>, %81, %cst_23 [1] : vector<16x32xf32> to vector<16xf32>
    %83 = vector.shape_cast %82 : vector<16xf32> to vector<16x1xf32>
    %cst_24 = arith.constant 3.200000e+01 : f32
    %84 = vector.broadcast %cst_24 : f32 to vector<16x1xf32>
    %85 = arith.divf %83, %84 : vector<16x1xf32>
    %86 = vector.broadcast %85 : vector<16x1xf32> to vector<16x32xf32>
    %87 = arith.subf %81, %86 : vector<16x32xf32>
    %88 = arith.mulf %87, %87 : vector<16x32xf32>
    %cst_25 = arith.constant dense<0.000000e+00> : vector<16xf32>
    %89 = vector.multi_reduction <add>, %88, %cst_25 [1] : vector<16x32xf32> to vector<16xf32>
    %90 = vector.shape_cast %89 : vector<16xf32> to vector<16x1xf32>
    %cst_26 = arith.constant 3.200000e+01 : f32
    %91 = vector.broadcast %cst_26 : f32 to vector<16x1xf32>
    %92 = arith.divf %90, %91 : vector<16x1xf32>
    %93 = vector.broadcast %85 : vector<16x1xf32> to vector<16x32xf32>
    %94 = arith.subf %81, %93 : vector<16x32xf32>
    %cst_27 = arith.constant 9.99999974E-6 : f32
    %95 = vector.broadcast %cst_27 : f32 to vector<16x1xf32>
    %96 = arith.addf %92, %95 : vector<16x1xf32>
    %97 = math.rsqrt %96 : vector<16x1xf32>
    %98 = vector.broadcast %97 : vector<16x1xf32> to vector<16x32xf32>
    %99 = arith.mulf %94, %98 : vector<16x32xf32>
    %100 = vector.extract_strided_slice %2 {offsets = [6, 0], sizes = [1, 32], strides = [1, 1]} : vector<11x32xf32> to vector<1x32xf32>
    %101 = vector.broadcast %100 : vector<1x32xf32> to vector<16x32xf32>
    %102 = arith.mulf %99, %101 : vector<16x32xf32>
    %103 = vector.extract_strided_slice %2 {offsets = [7, 0], sizes = [1, 32], strides = [1, 1]} : vector<11x32xf32> to vector<1x32xf32>
    %104 = vector.broadcast %103 : vector<1x32xf32> to vector<16x32xf32>
    %105 = arith.addf %102, %104 : vector<16x32xf32>
    %106 = vector.extract_strided_slice %55 {offsets = [0, 0], sizes = [16, 8], strides = [1, 1]} : vector<16x32xf32> to vector<16x8xf32>
    %107 = arith.truncf %106 : vector<16x8xf32> to vector<16x8xbf16>
    %108 = vector.extract_strided_slice %80 {offsets = [0, 0], sizes = [16, 8], strides = [1, 1]} : vector<16x32xf32> to vector<16x8xf32>
    %109 = arith.truncf %108 : vector<16x8xf32> to vector<16x8xbf16>
    %110 = vector.extract_strided_slice %105 {offsets = [0, 0], sizes = [16, 8], strides = [1, 1]} : vector<16x32xf32> to vector<16x8xf32>
    %111 = arith.truncf %110 : vector<16x8xf32> to vector<16x8xbf16>
    %cst_28 = arith.constant dense<0.000000e+00> : vector<16x16xf32>
    %112 = tpu.matmul %107, %109, %cst_28 {dimension_numbers = #tpu.dot_dimension_numbers<[1], [1], [0], [0], [0, 0, 1, 0], [], []>} : vector<16x8xbf16>, vector<16x8xbf16>, vector<16x16xf32> -> vector<16x16xf32>
    %cst_29 = arith.constant dense<0xFF800000> : vector<16xf32>
    %113 = vector.multi_reduction <maximumf>, %112, %cst_29 [1] : vector<16x16xf32> to vector<16xf32>
    %114 = vector.shape_cast %113 : vector<16xf32> to vector<16x1xf32>
    %115 = vector.broadcast %114 : vector<16x1xf32> to vector<16x16xf32>
    %116 = arith.subf %112, %115 : vector<16x16xf32>
    %117 = math.exp %116 : vector<16x16xf32>
    %cst_30 = arith.constant dense<0.000000e+00> : vector<16xf32>
    %118 = vector.multi_reduction <add>, %117, %cst_30 [1] : vector<16x16xf32> to vector<16xf32>
    %119 = vector.shape_cast %118 : vector<16xf32> to vector<16x1xf32>
    %120 = tpu.reciprocal %119 {approx = true} : vector<16x1xf32> -> vector<16x1xf32>
    %121 = vector.broadcast %120 : vector<16x1xf32> to vector<16x16xf32>
    %122 = arith.mulf %117, %121 : vector<16x16xf32>
    %123 = arith.truncf %122 : vector<16x16xf32> to vector<16x16xbf16>
    %cst_31 = arith.constant dense<0.000000e+00> : vector<16x8xf32>
    %124 = tpu.matmul %123, %111, %cst_31 {dimension_numbers = #tpu.dot_dimension_numbers<[1], [0], [0], [1], [0, 0, 1, 1], [], []>} : vector<16x16xbf16>, vector<16x8xbf16>, vector<16x8xf32> -> vector<16x8xf32>
    %125 = vector.extract_strided_slice %55 {offsets = [0, 8], sizes = [16, 8], strides = [1, 1]} : vector<16x32xf32> to vector<16x8xf32>
    %126 = arith.truncf %125 : vector<16x8xf32> to vector<16x8xbf16>
    %127 = vector.extract_strided_slice %80 {offsets = [0, 8], sizes = [16, 8], strides = [1, 1]} : vector<16x32xf32> to vector<16x8xf32>
    %128 = arith.truncf %127 : vector<16x8xf32> to vector<16x8xbf16>
    %129 = vector.extract_strided_slice %105 {offsets = [0, 8], sizes = [16, 8], strides = [1, 1]} : vector<16x32xf32> to vector<16x8xf32>
    %130 = arith.truncf %129 : vector<16x8xf32> to vector<16x8xbf16>
    %cst_32 = arith.constant dense<0.000000e+00> : vector<16x16xf32>
    %131 = tpu.matmul %126, %128, %cst_32 {dimension_numbers = #tpu.dot_dimension_numbers<[1], [1], [0], [0], [0, 0, 1, 0], [], []>} : vector<16x8xbf16>, vector<16x8xbf16>, vector<16x16xf32> -> vector<16x16xf32>
    %cst_33 = arith.constant dense<0xFF800000> : vector<16xf32>
    %132 = vector.multi_reduction <maximumf>, %131, %cst_33 [1] : vector<16x16xf32> to vector<16xf32>
    %133 = vector.shape_cast %132 : vector<16xf32> to vector<16x1xf32>
    %134 = vector.broadcast %133 : vector<16x1xf32> to vector<16x16xf32>
    %135 = arith.subf %131, %134 : vector<16x16xf32>
    %136 = math.exp %135 : vector<16x16xf32>
    %cst_34 = arith.constant dense<0.000000e+00> : vector<16xf32>
    %137 = vector.multi_reduction <add>, %136, %cst_34 [1] : vector<16x16xf32> to vector<16xf32>
    %138 = vector.shape_cast %137 : vector<16xf32> to vector<16x1xf32>
    %139 = tpu.reciprocal %138 {approx = true} : vector<16x1xf32> -> vector<16x1xf32>
    %140 = vector.broadcast %139 : vector<16x1xf32> to vector<16x16xf32>
    %141 = arith.mulf %136, %140 : vector<16x16xf32>
    %142 = arith.truncf %141 : vector<16x16xf32> to vector<16x16xbf16>
    %cst_35 = arith.constant dense<0.000000e+00> : vector<16x8xf32>
    %143 = tpu.matmul %142, %130, %cst_35 {dimension_numbers = #tpu.dot_dimension_numbers<[1], [0], [0], [1], [0, 0, 1, 1], [], []>} : vector<16x16xbf16>, vector<16x8xbf16>, vector<16x8xf32> -> vector<16x8xf32>
    %144 = vector.extract_strided_slice %55 {offsets = [0, 16], sizes = [16, 8], strides = [1, 1]} : vector<16x32xf32> to vector<16x8xf32>
    %145 = arith.truncf %144 : vector<16x8xf32> to vector<16x8xbf16>
    %146 = vector.extract_strided_slice %80 {offsets = [0, 16], sizes = [16, 8], strides = [1, 1]} : vector<16x32xf32> to vector<16x8xf32>
    %147 = arith.truncf %146 : vector<16x8xf32> to vector<16x8xbf16>
    %148 = vector.extract_strided_slice %105 {offsets = [0, 16], sizes = [16, 8], strides = [1, 1]} : vector<16x32xf32> to vector<16x8xf32>
    %149 = arith.truncf %148 : vector<16x8xf32> to vector<16x8xbf16>
    %cst_36 = arith.constant dense<0.000000e+00> : vector<16x16xf32>
    %150 = tpu.matmul %145, %147, %cst_36 {dimension_numbers = #tpu.dot_dimension_numbers<[1], [1], [0], [0], [0, 0, 1, 0], [], []>} : vector<16x8xbf16>, vector<16x8xbf16>, vector<16x16xf32> -> vector<16x16xf32>
    %cst_37 = arith.constant dense<0xFF800000> : vector<16xf32>
    %151 = vector.multi_reduction <maximumf>, %150, %cst_37 [1] : vector<16x16xf32> to vector<16xf32>
    %152 = vector.shape_cast %151 : vector<16xf32> to vector<16x1xf32>
    %153 = vector.broadcast %152 : vector<16x1xf32> to vector<16x16xf32>
    %154 = arith.subf %150, %153 : vector<16x16xf32>
    %155 = math.exp %154 : vector<16x16xf32>
    %cst_38 = arith.constant dense<0.000000e+00> : vector<16xf32>
    %156 = vector.multi_reduction <add>, %155, %cst_38 [1] : vector<16x16xf32> to vector<16xf32>
    %157 = vector.shape_cast %156 : vector<16xf32> to vector<16x1xf32>
    %158 = tpu.reciprocal %157 {approx = true} : vector<16x1xf32> -> vector<16x1xf32>
    %159 = vector.broadcast %158 : vector<16x1xf32> to vector<16x16xf32>
    %160 = arith.mulf %155, %159 : vector<16x16xf32>
    %161 = arith.truncf %160 : vector<16x16xf32> to vector<16x16xbf16>
    %cst_39 = arith.constant dense<0.000000e+00> : vector<16x8xf32>
    %162 = tpu.matmul %161, %149, %cst_39 {dimension_numbers = #tpu.dot_dimension_numbers<[1], [0], [0], [1], [0, 0, 1, 1], [], []>} : vector<16x16xbf16>, vector<16x8xbf16>, vector<16x8xf32> -> vector<16x8xf32>
    %163 = vector.extract_strided_slice %55 {offsets = [0, 24], sizes = [16, 8], strides = [1, 1]} : vector<16x32xf32> to vector<16x8xf32>
    %164 = arith.truncf %163 : vector<16x8xf32> to vector<16x8xbf16>
    %165 = vector.extract_strided_slice %80 {offsets = [0, 24], sizes = [16, 8], strides = [1, 1]} : vector<16x32xf32> to vector<16x8xf32>
    %166 = arith.truncf %165 : vector<16x8xf32> to vector<16x8xbf16>
    %167 = vector.extract_strided_slice %105 {offsets = [0, 24], sizes = [16, 8], strides = [1, 1]} : vector<16x32xf32> to vector<16x8xf32>
    %168 = arith.truncf %167 : vector<16x8xf32> to vector<16x8xbf16>
    %cst_40 = arith.constant dense<0.000000e+00> : vector<16x16xf32>
    %169 = tpu.matmul %164, %166, %cst_40 {dimension_numbers = #tpu.dot_dimension_numbers<[1], [1], [0], [0], [0, 0, 1, 0], [], []>} : vector<16x8xbf16>, vector<16x8xbf16>, vector<16x16xf32> -> vector<16x16xf32>
    %cst_41 = arith.constant dense<0xFF800000> : vector<16xf32>
    %170 = vector.multi_reduction <maximumf>, %169, %cst_41 [1] : vector<16x16xf32> to vector<16xf32>
    %171 = vector.shape_cast %170 : vector<16xf32> to vector<16x1xf32>
    %172 = vector.broadcast %171 : vector<16x1xf32> to vector<16x16xf32>
    %173 = arith.subf %169, %172 : vector<16x16xf32>
    %174 = math.exp %173 : vector<16x16xf32>
    %cst_42 = arith.constant dense<0.000000e+00> : vector<16xf32>
    %175 = vector.multi_reduction <add>, %174, %cst_42 [1] : vector<16x16xf32> to vector<16xf32>
    %176 = vector.shape_cast %175 : vector<16xf32> to vector<16x1xf32>
    %177 = tpu.reciprocal %176 {approx = true} : vector<16x1xf32> -> vector<16x1xf32>
    %178 = vector.broadcast %177 : vector<16x1xf32> to vector<16x16xf32>
    %179 = arith.mulf %174, %178 : vector<16x16xf32>
    %180 = arith.truncf %179 : vector<16x16xf32> to vector<16x16xbf16>
    %cst_43 = arith.constant dense<0.000000e+00> : vector<16x8xf32>
    %181 = tpu.matmul %180, %168, %cst_43 {dimension_numbers = #tpu.dot_dimension_numbers<[1], [0], [0], [1], [0, 0, 1, 1], [], []>} : vector<16x16xbf16>, vector<16x8xbf16>, vector<16x8xf32> -> vector<16x8xf32>
    %182 = tpu.concatenate %124, %143, %162, %181 in 1 : vector<16x8xf32>, vector<16x8xf32>, vector<16x8xf32>, vector<16x8xf32> -> vector<16x32xf32>
    %183 = arith.truncf %182 : vector<16x32xf32> to vector<16x32xbf16>
    %c0_44 = arith.constant 0 : index
    %c0_45 = arith.constant 0 : index
    %184 = vector.load %arg3[%c0_44, %c0_45] : memref<32x32xbf16, #tpu.memory_space<vmem>>, vector<32x32xbf16>
    %cst_46 = arith.constant dense<0.000000e+00> : vector<16x32xf32>
    %185 = tpu.matmul %183, %184, %cst_46 {dimension_numbers = #tpu.dot_dimension_numbers<[1], [0], [0], [1], [0, 0, 1, 1], [], []>} : vector<16x32xbf16>, vector<32x32xbf16>, vector<16x32xf32> -> vector<16x32xf32>
    %186 = arith.addf %185, %1 : vector<16x32xf32>
    %cst_47 = arith.constant dense<0.000000e+00> : vector<16xf32>
    %187 = vector.multi_reduction <add>, %186, %cst_47 [1] : vector<16x32xf32> to vector<16xf32>
    %188 = vector.shape_cast %187 : vector<16xf32> to vector<16x1xf32>
    %cst_48 = arith.constant 3.200000e+01 : f32
    %189 = vector.broadcast %cst_48 : f32 to vector<16x1xf32>
    %190 = arith.divf %188, %189 : vector<16x1xf32>
    %191 = vector.broadcast %190 : vector<16x1xf32> to vector<16x32xf32>
    %192 = arith.subf %186, %191 : vector<16x32xf32>
    %193 = arith.mulf %192, %192 : vector<16x32xf32>
    %cst_49 = arith.constant dense<0.000000e+00> : vector<16xf32>
    %194 = vector.multi_reduction <add>, %193, %cst_49 [1] : vector<16x32xf32> to vector<16xf32>
    %195 = vector.shape_cast %194 : vector<16xf32> to vector<16x1xf32>
    %cst_50 = arith.constant 3.200000e+01 : f32
    %196 = vector.broadcast %cst_50 : f32 to vector<16x1xf32>
    %197 = arith.divf %195, %196 : vector<16x1xf32>
    %198 = vector.broadcast %190 : vector<16x1xf32> to vector<16x32xf32>
    %199 = arith.subf %186, %198 : vector<16x32xf32>
    %cst_51 = arith.constant 9.99999974E-6 : f32
    %200 = vector.broadcast %cst_51 : f32 to vector<16x1xf32>
    %201 = arith.addf %197, %200 : vector<16x1xf32>
    %202 = math.rsqrt %201 : vector<16x1xf32>
    %203 = vector.broadcast %202 : vector<16x1xf32> to vector<16x32xf32>
    %204 = arith.mulf %199, %203 : vector<16x32xf32>
    %205 = vector.extract_strided_slice %2 {offsets = [8, 0], sizes = [1, 32], strides = [1, 1]} : vector<11x32xf32> to vector<1x32xf32>
    %206 = vector.broadcast %205 : vector<1x32xf32> to vector<16x32xf32>
    %207 = arith.mulf %204, %206 : vector<16x32xf32>
    %208 = vector.extract_strided_slice %2 {offsets = [9, 0], sizes = [1, 32], strides = [1, 1]} : vector<11x32xf32> to vector<1x32xf32>
    %209 = vector.broadcast %208 : vector<1x32xf32> to vector<16x32xf32>
    %210 = arith.addf %207, %209 : vector<16x32xf32>
    %211 = arith.truncf %210 : vector<16x32xf32> to vector<16x32xbf16>
    %212 = tpu.iota {dimensions = array<i32: 0>} : vector<16x1xi32>
    %c0_i32 = arith.constant 0 : i32
    %213 = vector.broadcast %c0_i32 : i32 to vector<16x1xi32>
    %214 = arith.cmpi ne, %212, %213 : vector<16x1xi32>
    %215 = arith.extui %214 : vector<16x1xi1> to vector<16x1xi32>
    %216 = arith.sitofp %215 : vector<16x1xi32> to vector<16x1xf32>
    %c15_i32 = arith.constant 15 : i32
    %217 = vector.broadcast %c15_i32 : i32 to vector<16x1xi32>
    %218 = arith.cmpi ne, %212, %217 : vector<16x1xi32>
    %219 = arith.extui %218 : vector<16x1xi1> to vector<16x1xi32>
    %220 = arith.sitofp %219 : vector<16x1xi32> to vector<16x1xf32>
    %cst_52 = arith.constant 0.000000e+00 : f32
    %221 = vector.broadcast %cst_52 : f32 to vector<16x32xf32>
    %c0_53 = arith.constant 0 : index
    %c0_54 = arith.constant 0 : index
    %222 = vector.load %arg4[%c0_53, %c0_54] : memref<32x64xbf16, #tpu.memory_space<vmem>>, vector<32x64xbf16>
    %cst_55 = arith.constant dense<0.000000e+00> : vector<16x64xf32>
    %223 = tpu.matmul %211, %222, %cst_55 {dimension_numbers = #tpu.dot_dimension_numbers<[1], [0], [0], [1], [0, 0, 1, 1], [], []>} : vector<16x32xbf16>, vector<32x64xbf16>, vector<16x64xf32> -> vector<16x64xf32>
    %224 = vector.extract_strided_slice %3 {offsets = [0, 0], sizes = [1, 64], strides = [1, 1]} : vector<5x64xf32> to vector<1x64xf32>
    %225 = vector.broadcast %224 : vector<1x64xf32> to vector<16x64xf32>
    %226 = arith.addf %223, %225 : vector<16x64xf32>
    %c1_i32 = arith.constant 1 : i32
    %227 = tpu.dynamic_rotate %226 by %c1_i32 dim 0 : vector<16x64xf32>, i32 -> vector<16x64xf32>
    %228 = vector.broadcast %216 : vector<16x1xf32> to vector<16x64xf32>
    %229 = arith.mulf %227, %228 : vector<16x64xf32>
    %c15_i32_56 = arith.constant 15 : i32
    %230 = tpu.dynamic_rotate %226 by %c15_i32_56 dim 0 : vector<16x64xf32>, i32 -> vector<16x64xf32>
    %231 = vector.broadcast %220 : vector<16x1xf32> to vector<16x64xf32>
    %232 = arith.mulf %230, %231 : vector<16x64xf32>
    %233 = vector.extract_strided_slice %3 {offsets = [1, 0], sizes = [1, 64], strides = [1, 1]} : vector<5x64xf32> to vector<1x64xf32>
    %234 = vector.broadcast %233 : vector<1x64xf32> to vector<16x64xf32>
    %235 = arith.mulf %229, %234 : vector<16x64xf32>
    %236 = vector.extract_strided_slice %3 {offsets = [2, 0], sizes = [1, 64], strides = [1, 1]} : vector<5x64xf32> to vector<1x64xf32>
    %237 = vector.broadcast %236 : vector<1x64xf32> to vector<16x64xf32>
    %238 = arith.mulf %226, %237 : vector<16x64xf32>
    %239 = arith.addf %235, %238 : vector<16x64xf32>
    %240 = vector.extract_strided_slice %3 {offsets = [3, 0], sizes = [1, 64], strides = [1, 1]} : vector<5x64xf32> to vector<1x64xf32>
    %241 = vector.broadcast %240 : vector<1x64xf32> to vector<16x64xf32>
    %242 = arith.mulf %232, %241 : vector<16x64xf32>
    %243 = arith.addf %239, %242 : vector<16x64xf32>
    %244 = vector.extract_strided_slice %3 {offsets = [4, 0], sizes = [1, 64], strides = [1, 1]} : vector<5x64xf32> to vector<1x64xf32>
    %245 = vector.broadcast %244 : vector<1x64xf32> to vector<16x64xf32>
    %246 = arith.addf %243, %245 : vector<16x64xf32>
    %cst_57 = arith.constant 5.000000e-01 : f32
    %247 = vector.broadcast %cst_57 : f32 to vector<16x64xf32>
    %248 = arith.mulf %247, %246 : vector<16x64xf32>
    %cst_58 = arith.constant 0.707106769 : f32
    %249 = vector.broadcast %cst_58 : f32 to vector<16x64xf32>
    %250 = arith.mulf %246, %249 : vector<16x64xf32>
    %251 = math.erf %250 : vector<16x64xf32>
    %cst_59 = arith.constant 1.000000e+00 : f32
    %252 = vector.broadcast %cst_59 : f32 to vector<16x64xf32>
    %253 = arith.addf %252, %251 : vector<16x64xf32>
    %254 = arith.mulf %248, %253 : vector<16x64xf32>
    %255 = arith.truncf %254 : vector<16x64xf32> to vector<16x64xbf16>
    %c0_60 = arith.constant 0 : index
    %c0_61 = arith.constant 0 : index
    %256 = vector.load %arg5[%c0_60, %c0_61] : memref<64x32xbf16, #tpu.memory_space<vmem>>, vector<64x32xbf16>
    %cst_62 = arith.constant dense<0.000000e+00> : vector<16x32xf32>
    %257 = tpu.matmul %255, %256, %cst_62 {dimension_numbers = #tpu.dot_dimension_numbers<[1], [0], [0], [1], [0, 0, 1, 1], [], []>} : vector<16x64xbf16>, vector<64x32xbf16>, vector<16x32xf32> -> vector<16x32xf32>
    %258 = arith.addf %221, %257 : vector<16x32xf32>
    %259 = vector.extract_strided_slice %2 {offsets = [10, 0], sizes = [1, 32], strides = [1, 1]} : vector<11x32xf32> to vector<1x32xf32>
    %260 = vector.broadcast %259 : vector<1x32xf32> to vector<16x32xf32>
    %261 = arith.addf %258, %260 : vector<16x32xf32>
    %262 = arith.addf %261, %186 : vector<16x32xf32>
    %c0_63 = arith.constant 0 : index
    %c0_64 = arith.constant 0 : index
    %c0_65 = arith.constant 0 : index
    %263 = vector.load %arg8[%c0_63, %c0_64, %c0_65] : memref<1x16x32xf32, #tpu.memory_space<vmem>>, vector<1x16x32xf32>
    %264 = vector.shape_cast %263 : vector<1x16x32xf32> to vector<16x32xf32>
    %265 = vector.shape_cast %262 : vector<16x32xf32> to vector<1x16x32xf32>
    tpu.vector_store %arg8[%c0_63, %c0_64, %c0_65], %265 {strides = array<i32>} : memref<1x16x32xf32, #tpu.memory_space<vmem>>, vector<1x16x32xf32>,
    return
  }
  func.func @transform_0(%arg0: i32) -> (i32, i32, i32) {
    %c0_i32 = arith.constant 0 : i32
    %c0_i32_0 = arith.constant 0 : i32
    %c0_i32_1 = arith.constant 0 : i32
    return %arg0, %c0_i32, %c0_i32_0 : i32, i32, i32
  }
  func.func @transform_1(%arg0: i32) -> (i32, i32) {
    %c0_i32 = arith.constant 0 : i32
    %c0_i32_0 = arith.constant 0 : i32
    %c0_i32_1 = arith.constant 0 : i32
    return %c0_i32, %c0_i32_0 : i32, i32
  }
  func.func @transform_2(%arg0: i32) -> (i32, i32) {
    %c0_i32 = arith.constant 0 : i32
    %c0_i32_0 = arith.constant 0 : i32
    %c0_i32_1 = arith.constant 0 : i32
    return %c0_i32, %c0_i32_0 : i32, i32
  }
  func.func @transform_3(%arg0: i32) -> (i32, i32) {
    %c0_i32 = arith.constant 0 : i32
    %c0_i32_0 = arith.constant 0 : i32
    %c0_i32_1 = arith.constant 0 : i32
    return %c0_i32, %c0_i32_0 : i32, i32
  }
  func.func @transform_4(%arg0: i32) -> (i32, i32) {
    %c0_i32 = arith.constant 0 : i32
    %c0_i32_0 = arith.constant 0 : i32
    %c0_i32_1 = arith.constant 0 : i32
    return %c0_i32, %c0_i32_0 : i32, i32
  }
  func.func @transform_5(%arg0: i32) -> (i32, i32) {
    %c0_i32 = arith.constant 0 : i32
    %c0_i32_0 = arith.constant 0 : i32
    %c0_i32_1 = arith.constant 0 : i32
    return %c0_i32, %c0_i32_0 : i32, i32
  }
  func.func @transform_6(%arg0: i32) -> (i32, i32) {
    %c0_i32 = arith.constant 0 : i32
    %c0_i32_0 = arith.constant 0 : i32
    %c0_i32_1 = arith.constant 0 : i32
    return %c0_i32, %c0_i32_0 : i32, i32
  }
  func.func @transform_7(%arg0: i32) -> (i32, i32, i32) {
    %c0_i32 = arith.constant 0 : i32
    %c0_i32_0 = arith.constant 0 : i32
    %c0_i32_1 = arith.constant 0 : i32
    return %arg0, %c0_i32, %c0_i32_0 : i32, i32, i32
  }
}

</mosaic_0001>

<llo_original>
// kernel: tpu_custom_call.1
$region0: #{tpu_custom_call.1}
  #allocation0 [shape = 'u32[]', space=smem, size = 0x4, offset = 0x4, fixed_abs, tag = 'smem constant byte address 0x4 - core index']
  #allocation1 [shape = 'u32[72,128]{1,0:T(1,128)}', space=vmem, size = 0x9000, scoped, tag = 'internal scratch']
  %s0 = inlined_call_operand.hbm [shape: f32[4,16,32], index: 0, kind: input, shape index: {}]
  %s1 = inlined_call_operand.vmem [shape: bf16[32,96], index: 1, kind: input, shape index: {}]
  %s2 = inlined_call_operand.vmem [shape: bf16[32,32], index: 2, kind: input, shape index: {}]
  %s3 = inlined_call_operand.vmem [shape: bf16[32,64], index: 3, kind: input, shape index: {}]
  %s4 = inlined_call_operand.vmem [shape: bf16[64,32], index: 4, kind: input, shape index: {}]
  %s5 = inlined_call_operand.hbm [shape: f32[11,32], index: 5, kind: input, shape index: {}]
  %s6 = inlined_call_operand.hbm [shape: f32[5,64], index: 6, kind: input, shape index: {}]
  %s7 = inlined_call_operand.hbm [shape: f32[4,16,32], index: 7, kind: output, shape index: {}]
  %s8 = sld [smem:[#allocation0]]
  $region73: #{tpu_custom_call.1} parent=0
    _
  %s10 = ssub.s32 1, %s8
  %s11 = scalar_select 0, %s10, %s8
  $region1: #{tpu_custom_call.1} parent=0
    #allocation2 [shape = 'u8[16384]{0}', space=vmem, size = 0x4000, scoped, tag = 'input window, operand 0']
    #allocation3 [shape = 's32[2]{0}', space=sflag, size = 0x8, scoped, tag = 'scoped memory for tpu_custom_call.1']
    #allocation4 [shape = 's32[2]{0}', space=sflag, size = 0x8, scoped, tag = 'scoped memory for tpu_custom_call.1']
    #allocation5 [shape = 'u8[8192]{0}', space=vmem, size = 0x2000, scoped, tag = 'input window, operand 5, single buffered']
    #allocation6 [shape = 's32[1]{0}', space=sflag, size = 0x4, scoped, tag = 'scoped memory for tpu_custom_call.1']
    #allocation7 [shape = 'u8[4096]{0}', space=vmem, size = 0x1000, scoped, tag = 'input window, operand 6, single buffered']
    #allocation8 [shape = 'u8[16384]{0}', space=vmem, size = 0x4000, scoped, tag = 'output window, operand 0']
    %12 = vsyncpa [#allocation3], 0
    %s13 = scalar_lea.sflag [#allocation3], 1
    %14 = vsyncpa %s13, 0
    %15 = vsyncpa [#allocation6], 0
    %16 = vsyncpa [#allocation4], 0
    %s17 = scalar_lea.sflag [#allocation4], 1
    %18 = vsyncpa %s17, 0
    loop: start=0, step=1, limit=6
    $region2: #{tpu_custom_call.1} parent=1 // loop_pre_header
      _
    $region3: #{tpu_custom_call.1} parent=1 // loop_header
      %s20 = sphi 0, %s24
      %p21 = scmp.ge.s32.totalorder %s20, 6
      %s30 = sphi 0, %s32
      %s33 = sphi 0, %s30
      %s34 = sphi 0, %s33
      %s50 = sphi 0, %s34
      %s54 = sphi 0, %s54
      %s56 = sphi 0, %s54
      %s57 = sphi 0, %s56
      %s71 = sphi 0, %s57
      %s75 = sphi 0, %s75
      %s77 = sphi 0, %s75
      %s78 = sphi 0, %s77
      %s92 = sphi 0, %s78
      %s96 = sphi 0, %s96
      %s98 = sphi 0, %s96
      %s99 = sphi 0, %s98
      %s113 = sphi 0, %s99
      %s117 = sphi 0, %s117
      %s119 = sphi 0, %s117
      %s120 = sphi 0, %s119
      %s134 = sphi 0, %s120
      %s138 = sphi 0, %s138
      %s140 = sphi 0, %s138
      %s141 = sphi 0, %s140
      %s155 = sphi 0, %s141
      %s159 = sphi 0, %s159
      %s161 = sphi 0, %s159
      %s162 = sphi 0, %s161
      %s176 = sphi 0, %s162
      %s182 = sphi 0, %s184
      %s185 = sphi 0, %s182
      %s186 = sphi 0, %s185
      %s202 = sphi 0, %s186
    $region4: #{tpu_custom_call.1} parent=1 // loop_header_branch
      %23 = sbr.rel (%p21) target = $region8
    $region5: #{tpu_custom_call.1} parent=1 // loop_body
      %s25 = ssub.s32 %s20, 1
      %s26 = ssub.s32 %s20, 2
      %s27 = sadd.s32 %s20, 1
      %s28 = ssub.s32 %s20, %s27
      %p29 = scmp.eq.s32.totalorder %s28, 0
      %s31 = sadd.s32 %s30, 1
      %s32 = scalar_select %p29, %s30, %s31
      %p35 = pneg %p29
      %p36 = scmp.eq.s32.totalorder %s20, 3
      %p37 = por %p35, %p36
      %p38 = scmp.ne.s32.totalorder %s30, %s33
      %p39 = scmp.eq.s32.totalorder %s20, 0
      %p40 = por %p38, %p39
      %p41 = scmp.ne.s32.totalorder %s30, %s33
      %p42 = scmp.eq.s32.totalorder %s25, 3
      %p43 = por %p41, %p42
      %p44 = scmp.ne.s32.totalorder %s33, %s34
      %p45 = scmp.eq.s32.totalorder %s25, 0
      %p46 = por %p44, %p45
      %p47 = scmp.ne.s32.totalorder %s33, %s34
      %p48 = scmp.eq.s32.totalorder %s26, 3
      %p49 = por %p47, %p48
      %p51 = scmp.ne.s32.totalorder %s34, %s50
      %p52 = scmp.eq.s32.totalorder %s26, 0
      %p53 = por %p51, %p52
      %s55 = sadd.s32 %s54, 1
      %p58 = scmp.eq.s32.totalorder %s20, 3
      %p59 = scmp.ne.s32.totalorder %s54, %s56
      %p60 = scmp.eq.s32.totalorder %s20, 0
      %p61 = por %p59, %p60
      %p62 = scmp.ne.s32.totalorder %s54, %s56
      %p63 = scmp.eq.s32.totalorder %s25, 3
      %p64 = por %p62, %p63
      %p65 = scmp.ne.s32.totalorder %s56, %s57
      %p66 = scmp.eq.s32.totalorder %s25, 0
      %p67 = por %p65, %p66
      %p68 = scmp.ne.s32.totalorder %s56, %s57
      %p69 = scmp.eq.s32.totalorder %s26, 3
      %p70 = por %p68, %p69
      %p72 = scmp.ne.s32.totalorder %s57, %s71
      %p73 = scmp.eq.s32.totalorder %s26, 0
      %p74 = por %p72, %p73
      %s76 = sadd.s32 %s75, 1
      %p79 = scmp.eq.s32.totalorder %s20, 3
      %p80 = scmp.ne.s32.totalorder %s75, %s77
      %p81 = scmp.eq.s32.totalorder %s20, 0
      %p82 = por %p80, %p81
      %p83 = scmp.ne.s32.totalorder %s75, %s77
      %p84 = scmp.eq.s32.totalorder %s25, 3
      %p85 = por %p83, %p84
      %p86 = scmp.ne.s32.totalorder %s77, %s78
      %p87 = scmp.eq.s32.totalorder %s25, 0
      %p88 = por %p86, %p87
      %p89 = scmp.ne.s32.totalorder %s77, %s78
      %p90 = scmp.eq.s32.totalorder %s26, 3
      %p91 = por %p89, %p90
      %p93 = scmp.ne.s32.totalorder %s78, %s92
      %p94 = scmp.eq.s32.totalorder %s26, 0
      %p95 = por %p93, %p94
      %s97 = sadd.s32 %s96, 1
      %p100 = scmp.eq.s32.totalorder %s20, 3
      %p101 = scmp.ne.s32.totalorder %s96, %s98
      %p102 = scmp.eq.s32.totalorder %s20, 0
      %p103 = por %p101, %p102
      %p104 = scmp.ne.s32.totalorder %s96, %s98
      %p105 = scmp.eq.s32.totalorder %s25, 3
      %p106 = por %p104, %p105
      %p107 = scmp.ne.s32.totalorder %s98, %s99
      %p108 = scmp.eq.s32.totalorder %s25, 0
      %p109 = por %p107, %p108
      %p110 = scmp.ne.s32.totalorder %s98, %s99
      %p111 = scmp.eq.s32.totalorder %s26, 3
      %p112 = por %p110, %p111
      %p114 = scmp.ne.s32.totalorder %s99, %s113
      %p115 = scmp.eq.s32.totalorder %s26, 0
      %p116 = por %p114, %p115
      %s118 = sadd.s32 %s117, 1
      %p121 = scmp.eq.s32.totalorder %s20, 3
      %p122 = scmp.ne.s32.totalorder %s117, %s119
      %p123 = scmp.eq.s32.totalorder %s20, 0
      %p124 = por %p122, %p123
      %p125 = scmp.ne.s32.totalorder %s117, %s119
      %p126 = scmp.eq.s32.totalorder %s25, 3
      %p127 = por %p125, %p126
      %p128 = scmp.ne.s32.totalorder %s119, %s120
      %p129 = scmp.eq.s32.totalorder %s25, 0
      %p130 = por %p128, %p129
      %p131 = scmp.ne.s32.totalorder %s119, %s120
      %p132 = scmp.eq.s32.totalorder %s26, 3
      %p133 = por %p131, %p132
      %p135 = scmp.ne.s32.totalorder %s120, %s134
      %p136 = scmp.eq.s32.totalorder %s26, 0
      %p137 = por %p135, %p136
      %s139 = sadd.s32 %s138, 1
      %p142 = scmp.eq.s32.totalorder %s20, 3
      %p143 = scmp.ne.s32.totalorder %s138, %s140
      %p144 = scmp.eq.s32.totalorder %s20, 0
      %p145 = por %p143, %p144
      %p146 = scmp.ne.s32.totalorder %s138, %s140
      %p147 = scmp.eq.s32.totalorder %s25, 3
      %p148 = por %p146, %p147
      %p149 = scmp.ne.s32.totalorder %s140, %s141
      %p150 = scmp.eq.s32.totalorder %s25, 0
      %p151 = por %p149, %p150
      %p152 = scmp.ne.s32.totalorder %s140, %s141
      %p153 = scmp.eq.s32.totalorder %s26, 3
      %p154 = por %p152, %p153
      %p156 = scmp.ne.s32.totalorder %s141, %s155
      %p157 = scmp.eq.s32.totalorder %s26, 0
      %p158 = por %p156, %p157
      %s160 = sadd.s32 %s159, 1
      %p163 = scmp.eq.s32.totalorder %s20, 3
      %p164 = scmp.ne.s32.totalorder %s159, %s161
      %p165 = scmp.eq.s32.totalorder %s20, 0
      %p166 = por %p164, %p165
      %p167 = scmp.ne.s32.totalorder %s159, %s161
      %p168 = scmp.eq.s32.totalorder %s25, 3
      %p169 = por %p167, %p168
      %p170 = scmp.ne.s32.totalorder %s161, %s162
      %p171 = scmp.eq.s32.totalorder %s25, 0
      %p172 = por %p170, %p171
      %p173 = scmp.ne.s32.totalorder %s161, %s162
      %p174 = scmp.eq.s32.totalorder %s26, 3
      %p175 = por %p173, %p174
      %p177 = scmp.ne.s32.totalorder %s162, %s176
      %p178 = scmp.eq.s32.totalorder %s26, 0
      %p179 = por %p177, %p178
      %s180 = ssub.s32 %s20, %s27
      %p181 = scmp.eq.s32.totalorder %s180, 0
      %s183 = sadd.s32 %s182, 1
      %s184 = scalar_select %p181, %s182, %s183
      %p187 = pneg %p181
      %p188 = scmp.eq.s32.totalorder %s20, 3
      %p189 = por %p187, %p188
      %p190 = scmp.ne.s32.totalorder %s182, %s185
      %p191 = scmp.eq.s32.totalorder %s20, 0
      %p192 = por %p190, %p191
      %p193 = scmp.ne.s32.totalorder %s182, %s185
      %p194 = scmp.eq.s32.totalorder %s25, 3
      %p195 = por %p193, %p194
      %p196 = scmp.ne.s32.totalorder %s185, %s186
      %p197 = scmp.eq.s32.totalorder %s25, 0
      %p198 = por %p196, %p197
      %p199 = scmp.ne.s32.totalorder %s185, %s186
      %p200 = scmp.eq.s32.totalorder %s26, 3
      %p201 = por %p199, %p200
      %p203 = scmp.ne.s32.totalorder %s186, %s202
      %p204 = scmp.eq.s32.totalorder %s26, 0
      %p205 = por %p203, %p204
      %p206 = scmp.le.s32.totalorder 1, %s20
      %p207 = scmp.lt.s32.totalorder %s20, 5
      %p208 = pnand %p206, %p207
      %p209 = pneg %p208
      // Predicated region
      $region9: #{tpu_custom_call.1} parent=5 // pred_check
        _
      $region10: #{tpu_custom_call.1} parent=5 // pred_check_branch
        %211 = sbr.rel (%p208) target = $region12
      $region11: #{tpu_custom_call.1} parent=5 // pred_region
        %s212 = ssub.s32 %s20, 1
        // Predicated region
        $region13: #{tpu_custom_call.1} parent=11 // pred_check
          %p213 = pneg %p67
        $region14: #{tpu_custom_call.1} parent=11 // pred_check_branch
          %215 = sbr.rel (%p213) target = $region16
        $region15: #{tpu_custom_call.1} parent=11 // pred_region
          _
        $region16: #{tpu_custom_call.1} parent=11 // pred_fallthru
          _
        // Predicated region
        $region17: #{tpu_custom_call.1} parent=11 // pred_check
          %p216 = pneg %p88
        $region18: #{tpu_custom_call.1} parent=11 // pred_check_branch
          %218 = sbr.rel (%p216) target = $region20
        $region19: #{tpu_custom_call.1} parent=11 // pred_region
          _
        $region20: #{tpu_custom_call.1} parent=11 // pred_fallthru
          _
        // Predicated region
        $region21: #{tpu_custom_call.1} parent=11 // pred_check
          %p219 = pneg %p109
        $region22: #{tpu_custom_call.1} parent=11 // pred_check_branch
          %221 = sbr.rel (%p219) target = $region24
        $region23: #{tpu_custom_call.1} parent=11 // pred_region
          _
        $region24: #{tpu_custom_call.1} parent=11 // pred_fallthru
          _
        // Predicated region
        $region25: #{tpu_custom_call.1} parent=11 // pred_check
          %p222 = pneg %p130
        $region26: #{tpu_custom_call.1} parent=11 // pred_check_branch
          %224 = sbr.rel (%p222) target = $region28
        $region27: #{tpu_custom_call.1} parent=11 // pred_region
          _
        $region28: #{tpu_custom_call.1} parent=11 // pred_fallthru
          _
        // Predicated region
        $region29: #{tpu_custom_call.1} parent=11 // pred_check
          %p225 = pneg %p151
        $region30: #{tpu_custom_call.1} parent=11 // pred_check_branch
          %227 = sbr.rel (%p225) target = $region32
        $region31: #{tpu_custom_call.1} parent=11 // pred_region
          %229 = vsyncadd [#allocation6], 0
          %s230 = sshll.u32 %s5, 4
          %s231 = int_to_ptr.hbm [resolvable:$true] %s230
          %s232 = sshll.u32 [#allocation5], 4
          %s233 = int_to_ptr.vmem [resolvable:$true] %s232
          %238 = dma.hbm_to_vmem [thread:$0]  %s231, 256, %s233, [#allocation6], 128, 128, 8
        $region32: #{tpu_custom_call.1} parent=11 // pred_fallthru
          _
        // Predicated region
        $region33: #{tpu_custom_call.1} parent=11 // pred_check
          %p239 = pneg %p172
        $region34: #{tpu_custom_call.1} parent=11 // pred_check_branch
          %241 = sbr.rel (%p239) target = $region36
        $region35: #{tpu_custom_call.1} parent=11 // pred_region
          %243 = vsyncadd [#allocation6], 0
          %s245 = sshll.u32 %s6, 4
          %s246 = int_to_ptr.hbm [resolvable:$true] %s245
          %s247 = sshll.u32 [#allocation7], 4
          %s248 = int_to_ptr.vmem [resolvable:$true] %s247
          %250 = dma.hbm_to_vmem [thread:$0]  %s246, 128, %s248, [#allocation6]
        $region36: #{tpu_custom_call.1} parent=11 // pred_fallthru
          _
      $region12: #{tpu_custom_call.1} parent=5 // pred_fallthru
        _
      %p251 = scmp.lt.s32.totalorder %s20, 4
      // Predicated region
      $region37: #{tpu_custom_call.1} parent=5 // pred_check
        %p252 = pneg %p251
      $region38: #{tpu_custom_call.1} parent=5 // pred_check_branch
        %254 = sbr.rel (%p252) target = $region40
      $region39: #{tpu_custom_call.1} parent=5 // pred_region
        // Predicated region
        $region41: #{tpu_custom_call.1} parent=39 // pred_check
          %p255 = pneg %p40
        $region42: #{tpu_custom_call.1} parent=39 // pred_check_branch
          %257 = sbr.rel (%p255) target = $region44
        $region43: #{tpu_custom_call.1} parent=39 // pred_region
          %s258 = sand.u32 %s30, 1
          %s259 = scalar_lea.sflag [#allocation3], %s258
          %s260 = sand.u32 %s30, 1
          %s261 = smul.addr %s260, 16
          %s262 = scalar_lea.vmem [#allocation2], %s261
          %264 = vsyncadd %s259, 0
          %s265 = smul.addr %s20, 2
          %s266 = smul.addr %s265, 8
          %s267 = scalar_lea.hbm %s0, %s266
          %s268 = sshll.u32 %s267, 4
          %s269 = int_to_ptr.hbm [resolvable:$true] %s268
          %s270 = sshll.u32 %s262, 4
          %s271 = int_to_ptr.vmem [resolvable:$true] %s270
          %276 = dma.hbm_to_vmem [thread:$0]  %s269, 256, %s271, %s259, 128, 128, 8
        $region44: #{tpu_custom_call.1} parent=39 // pred_fallthru
          _
      $region40: #{tpu_custom_call.1} parent=5 // pred_fallthru
        _
      %p277 = scmp.le.s32.totalorder 1, %s20
      %p278 = scmp.lt.s32.totalorder %s20, 5
      %p279 = pnand %p277, %p278
      %p280 = pneg %p279
      // Predicated region
      $region45: #{tpu_custom_call.1} parent=5 // pred_check
        _
      $region46: #{tpu_custom_call.1} parent=5 // pred_check_branch
        %282 = sbr.rel (%p279) target = $region48
      $region47: #{tpu_custom_call.1} parent=5 // pred_region
        %s283 = ssub.s32 %s20, 1
        %s284 = sand.u32 %s33, 1
        %s285 = scalar_lea.sflag [#allocation3], %s284
        %s286 = sand.u32 %s33, 1
        %s287 = smul.addr %s286, 16
        %s288 = scalar_lea.vmem [#allocation2], %s287
        // Predicated region
        $region49: #{tpu_custom_call.1} parent=47 // pred_check
          %p289 = pneg %p46
        $region50: #{tpu_custom_call.1} parent=47 // pred_check_branch
          %291 = sbr.rel (%p289) target = $region52
        $region51: #{tpu_custom_call.1} parent=47 // pred_region
          %293 = dma.done %s285, 256
        $region52: #{tpu_custom_call.1} parent=47 // pred_fallthru
          _
        // Predicated region
        $region53: #{tpu_custom_call.1} parent=47 // pred_check
          %p294 = pneg %p151
        $region54: #{tpu_custom_call.1} parent=47 // pred_check_branch
          %296 = sbr.rel (%p294) target = $region56
        $region55: #{tpu_custom_call.1} parent=47 // pred_region
          %298 = dma.done [#allocation6], 256
        $region56: #{tpu_custom_call.1} parent=47 // pred_fallthru
          _
        // Predicated region
        $region57: #{tpu_custom_call.1} parent=47 // pred_check
          %p299 = pneg %p172
        $region58: #{tpu_custom_call.1} parent=47 // pred_check_branch
          %301 = sbr.rel (%p299) target = $region60
        $region59: #{tpu_custom_call.1} parent=47 // pred_region
          %303 = dma.done [#allocation6], 128
        $region60: #{tpu_custom_call.1} parent=47 // pred_fallthru
          _
        %s304 = sand.u32 %s33, 1
        %s305 = scalar_lea.sflag [#allocation3], %s304
        %s306 = sand.u32 %s33, 1
        %s307 = smul.addr %s306, 16
        %s308 = scalar_lea.vmem [#allocation2], %s307
        %p309 = pneg %p46
        %p310 = pneg %p43
        %p311 = pneg %p67
        %p312 = pneg %p64
        %p313 = pneg %p88
        %p314 = pneg %p85
        %p315 = pneg %p109
        %p316 = pneg %p106
        %p317 = pneg %p130
        %p318 = pneg %p127
        %p319 = pneg %p151
        %p320 = pneg %p148
        %p321 = pneg %p172
        %p322 = pneg %p169
        %p323 = pneg %p198
        %p324 = pneg %p195
        %s325 = sand.u32 %s185, 1
        %s326 = scalar_lea.sflag [#allocation4], %s325
        %s327 = sand.u32 %s185, 1
        %s328 = smul.addr %s327, 16
        %s329 = scalar_lea.vmem [#allocation8], %s328
        %v331 = vld [vmem:[%s288] sm:$0xff]
        %v332 = vld [vmem:[%s288 + $0x8] sm:$0xff]
        %v333 = vld [vmem:[#allocation5] sm:$0xff]
        %v334 = vld [vmem:[#allocation5 + $0x8] sm:$0x7]
        %v335 = vld [vmem:[#allocation7] sm:$0x1f]
        %vm336 = vcmask 261120
        %v337 = vsel %vm336, %v331, 0.0
        %338 = vadd.xlane.f32.xlu0 %v337
        %v339 = vpop.xlane.xlu0 %338
        %v340 = vsel %vm336, %v332, 0.0
        %341 = vadd.xlane.f32.xlu0 %v340
        %v342 = vpop.xlane.xlu0 %341
        %v343 = vrcp.pop 32.0
        %v344 = vmul.f32 32.0, %v343
        %v345 = vsub.f32 1.0, %v344
        %v346 = vmul.f32 %v343, %v345
        %v347 = vadd.f32 %v343, %v346
        %vm348 = vweird.f32 %v343
        %v349 = vsel %vm348, %v343, %v347
        %v350 = vmul.f32 %v339, %v349
        %v351 = vmul.f32 %v342, %v349
        %v352 = vsub.f32 %v331, %v350
        %v353 = vsub.f32 %v332, %v351
        %v354 = vmul.f32 %v352, %v352
        %v355 = vmul.f32 %v353, %v353
        %v356 = vsel %vm336, %v354, 0.0
        %357 = vadd.xlane.f32.xlu0 %v356
        %v358 = vpop.xlane.xlu0 %357
        %v359 = vsel %vm336, %v355, 0.0
        %360 = vadd.xlane.f32.xlu0 %v359
        %v361 = vpop.xlane.xlu0 %360
        %v362 = vmul.f32 %v358, %v349
        %v363 = vmul.f32 %v361, %v349
        %v364 = vadd.f32 %v362, 1e-05
        %v365 = vadd.f32 %v363, 1e-05
        %v366 = vrsqrt.pop %v364
        %v367 = vmul.f32 %v366, %v364
        %v368 = vmul.f32 %v367, %v366
        %v369 = vmul.f32 0.5, %v368
        %v370 = vsub.f32 1.5, %v369
        %v371 = vmul.f32 %v366, %v370
        %vm372 = vweird.f32 %v364
        %vm373 = vweird.f32 %v366
        %vm374 = vmor %vm372, %vm373
        %v375 = vsel %vm374, %v366, %v371
        %v376 = vrsqrt.pop %v365
        %v377 = vmul.f32 %v376, %v365
        %v378 = vmul.f32 %v377, %v376
        %v379 = vmul.f32 0.5, %v378
        %v380 = vsub.f32 1.5, %v379
        %v381 = vmul.f32 %v376, %v380
        %vm382 = vweird.f32 %v365
        %vm383 = vweird.f32 %v376
        %vm384 = vmor %vm382, %vm383
        %v385 = vsel %vm384, %v376, %v381
        %v386 = vmul.f32 %v352, %v375
        %v387 = vmul.f32 %v353, %v385
        %v388 = vperm.slane %v333, 0
        %v389 = vmul.f32 %v386, %v388
        %v390 = vmul.f32 %v387, %v388
        %v391 = vperm.slane %v333, 1
        %v392 = vadd.f32 %v389, %v391
        %v393 = vadd.f32 %v390, %v391
        %v394 = vpack.c.bf16 %v393, %v392
        %v395 = vld [vmem:[%s1] sm:$0xf]
        %v396 = vld [vmem:[%s1 + $0x4] sm:$0xf]
        %v397 = vld [vmem:[%s1 + $0x8] sm:$0xf]
        %v398 = vld [vmem:[%s1 + $0xc] sm:$0xf]
        %v403 = vunpack.c.l.b16 %v395
        %v404 = vunpack.c.l.b16 %v396
        %v405 = vunpack.c.l.b16 %v397
        %v406 = vunpack.c.l.b16 %v398
        %v407 = vpack.c.b16 %v404, %v403
        %v408 = vpack.c.b16 %v406, %v405
        %v412 = vsel %vm336, %v394, 0
        %414 = vmatpush.bf16.msra.mxu0 0
        %415 = vmatpush.bf16.msra.mxu0 0
        %416 = vmatpush.bf16.msra.mxu0 0
        %417 = vmatpush.bf16.msra.mxu0 0
        %418 = vmatpush.bf16.msra.mxu0 0
        %419 = vmatpush.bf16.msra.mxu0 0
        %420 = vmatpush.bf16.msra.mxu0 %v408
        %421 = vmatpush.bf16.msra.mxu0 %v407
        %422 = vmatmul.bf16.gmra.mxu0 %v412
        %v423 = vpop.f32.mrf.mxu0
        %v424 = vadd.f32 0.0, %v423
        %v425 = vpop.f32.mrf.mxu0
        %v426 = vadd.f32 0.0, %v425
        %427 = vdwg.mxu0
        %v428 = vsel %vm336, %v424, 0.0
        %429 = vadd.xlane.f32.xlu0 %v428
        %v430 = vpop.xlane.xlu0 %429
        %v431 = vsel %vm336, %v426, 0.0
        %432 = vadd.xlane.f32.xlu0 %v431
        %v433 = vpop.xlane.xlu0 %432
        %v434 = vmul.f32 %v430, %v349
        %v435 = vmul.f32 %v433, %v349
        %v436 = vsub.f32 %v424, %v434
        %v437 = vsub.f32 %v426, %v435
        %v438 = vmul.f32 %v436, %v436
        %v439 = vmul.f32 %v437, %v437
        %v440 = vsel %vm336, %v438, 0.0
        %441 = vadd.xlane.f32.xlu0 %v440
        %v442 = vpop.xlane.xlu0 %441
        %v443 = vsel %vm336, %v439, 0.0
        %444 = vadd.xlane.f32.xlu0 %v443
        %v445 = vpop.xlane.xlu0 %444
        %v446 = vmul.f32 %v442, %v349
        %v447 = vmul.f32 %v445, %v349
        %v448 = vadd.f32 %v446, 1e-05
        %v449 = vadd.f32 %v447, 1e-05
        %v450 = vrsqrt.pop %v448
        %v451 = vmul.f32 %v450, %v448
        %v452 = vmul.f32 %v451, %v450
        %v453 = vmul.f32 0.5, %v452
        %v454 = vsub.f32 1.5, %v453
        %v455 = vmul.f32 %v450, %v454
        %vm456 = vweird.f32 %v448
        %vm457 = vweird.f32 %v450
        %vm458 = vmor %vm456, %vm457
        %v459 = vsel %vm458, %v450, %v455
        %v460 = vrsqrt.pop %v449
        %v461 = vmul.f32 %v460, %v449
        %v462 = vmul.f32 %v461, %v460
        %v463 = vmul.f32 0.5, %v462
        %v464 = vsub.f32 1.5, %v463
        %v465 = vmul.f32 %v460, %v464
        %vm466 = vweird.f32 %v449
        %vm467 = vweird.f32 %v460
        %vm468 = vmor %vm466, %vm467
        %v469 = vsel %vm468, %v460, %v465
        %v470 = vmul.f32 %v436, %v459
        %v471 = vmul.f32 %v437, %v469
        %v472 = vperm.slane %v333, 2
        %v473 = vmul.f32 %v470, %v472
        %v474 = vmul.f32 %v471, %v472
        %v475 = vperm.slane %v333, 3
        %v476 = vadd.f32 %v473, %v475
        %v477 = vadd.f32 %v474, %v475
        %480 = vrot.lane.b32.xlu0 %v424, 96
        %v481 = vpop.permute.xlu0 %480
        %482 = vrot.lane.b32.xlu0 %v426, 96
        %v483 = vpop.permute.xlu0 %482
        %v486 = vsel %vm336, %v481, 0.0
        %487 = vadd.xlane.f32.xlu0 %v486
        %v488 = vpop.xlane.xlu0 %487
        %v489 = vsel %vm336, %v483, 0.0
        %490 = vadd.xlane.f32.xlu0 %v489
        %v491 = vpop.xlane.xlu0 %490
        %v492 = vmul.f32 %v488, %v349
        %v493 = vmul.f32 %v491, %v349
        %v494 = vsub.f32 %v424, %v492
        %v495 = vsub.f32 %v426, %v493
        %v496 = vmul.f32 %v494, %v494
        %v497 = vmul.f32 %v495, %v495
        %500 = vrot.lane.b32.xlu0 %v496, 96
        %v501 = vpop.permute.xlu0 %500
        %502 = vrot.lane.b32.xlu0 %v497, 96
        %v503 = vpop.permute.xlu0 %502
        %v506 = vsel %vm336, %v501, 0.0
        %507 = vadd.xlane.f32.xlu0 %v506
        %v508 = vpop.xlane.xlu0 %507
        %v509 = vsel %vm336, %v503, 0.0
        %510 = vadd.xlane.f32.xlu0 %v509
        %v511 = vpop.xlane.xlu0 %510
        %v512 = vmul.f32 %v508, %v349
        %v513 = vmul.f32 %v511, %v349
        %v514 = vadd.f32 %v512, 1e-05
        %v515 = vadd.f32 %v513, 1e-05
        %v516 = vrsqrt.pop %v514
        %v517 = vmul.f32 %v516, %v514
        %v518 = vmul.f32 %v517, %v516
        %v519 = vmul.f32 0.5, %v518
        %v520 = vsub.f32 1.5, %v519
        %v521 = vmul.f32 %v516, %v520
        %vm522 = vweird.f32 %v514
        %vm523 = vweird.f32 %v516
        %vm524 = vmor %vm522, %vm523
        %v525 = vsel %vm524, %v516, %v521
        %v526 = vrsqrt.pop %v515
        %v527 = vmul.f32 %v526, %v515
        %v528 = vmul.f32 %v527, %v526
        %v529 = vmul.f32 0.5, %v528
        %v530 = vsub.f32 1.5, %v529
        %v531 = vmul.f32 %v526, %v530
        %vm532 = vweird.f32 %v515
        %vm533 = vweird.f32 %v526
        %vm534 = vmor %vm532, %vm533
        %v535 = vsel %vm534, %v526, %v531
        %v536 = vmul.f32 %v494, %v525
        %v537 = vmul.f32 %v495, %v535
        %v538 = vperm.slane %v333, 4
        %540 = vrot.lane.b32.xlu0 %v538, 32
        %v541 = vpop.permute.xlu0 %540
        %v543 = vmul.f32 %v536, %v541
        %v544 = vmul.f32 %v537, %v541
        %v545 = vperm.slane %v333, 5
        %547 = vrot.lane.b32.xlu0 %v545, 32
        %v548 = vpop.permute.xlu0 %547
        %v550 = vadd.f32 %v543, %v548
        %v551 = vadd.f32 %v544, %v548
        %552 = vrot.lane.b32.xlu0 %v424, 64
        %v553 = vpop.permute.xlu0 %552
        %554 = vrot.lane.b32.xlu0 %v426, 64
        %v555 = vpop.permute.xlu0 %554
        %v558 = vsel %vm336, %v553, 0.0
        %559 = vadd.xlane.f32.xlu0 %v558
        %v560 = vpop.xlane.xlu0 %559
        %v561 = vsel %vm336, %v555, 0.0
        %562 = vadd.xlane.f32.xlu0 %v561
        %v563 = vpop.xlane.xlu0 %562
        %v564 = vmul.f32 %v560, %v349
        %v565 = vmul.f32 %v563, %v349
        %v566 = vsub.f32 %v424, %v564
        %v567 = vsub.f32 %v426, %v565
        %v568 = vmul.f32 %v566, %v566
        %v569 = vmul.f32 %v567, %v567
        %572 = vrot.lane.b32.xlu0 %v568, 64
        %v573 = vpop.permute.xlu0 %572
        %574 = vrot.lane.b32.xlu0 %v569, 64
        %v575 = vpop.permute.xlu0 %574
        %v578 = vsel %vm336, %v573, 0.0
        %579 = vadd.xlane.f32.xlu0 %v578
        %v580 = vpop.xlane.xlu0 %579
        %v581 = vsel %vm336, %v575, 0.0
        %582 = vadd.xlane.f32.xlu0 %v581
        %v583 = vpop.xlane.xlu0 %582
        %v584 = vmul.f32 %v580, %v349
        %v585 = vmul.f32 %v583, %v349
        %v586 = vadd.f32 %v584, 1e-05
        %v587 = vadd.f32 %v585, 1e-05
        %v588 = vrsqrt.pop %v586
        %v589 = vmul.f32 %v588, %v586
        %v590 = vmul.f32 %v589, %v588
        %v591 = vmul.f32 0.5, %v590
        %v592 = vsub.f32 1.5, %v591
        %v593 = vmul.f32 %v588, %v592
        %vm594 = vweird.f32 %v586
        %vm595 = vweird.f32 %v588
        %vm596 = vmor %vm594, %vm595
        %v597 = vsel %vm596, %v588, %v593
        %v598 = vrsqrt.pop %v587
        %v599 = vmul.f32 %v598, %v587
        %v600 = vmul.f32 %v599, %v598
        %v601 = vmul.f32 0.5, %v600
        %v602 = vsub.f32 1.5, %v601
        %v603 = vmul.f32 %v598, %v602
        %vm604 = vweird.f32 %v587
        %vm605 = vweird.f32 %v598
        %vm606 = vmor %vm604, %vm605
        %v607 = vsel %vm606, %v598, %v603
        %v608 = vmul.f32 %v566, %v597
        %v609 = vmul.f32 %v567, %v607
        %v610 = vperm.slane %v333, 6
        %612 = vrot.lane.b32.xlu0 %v610, 64
        %v613 = vpop.permute.xlu0 %612
        %v615 = vmul.f32 %v608, %v613
        %v616 = vmul.f32 %v609, %v613
        %v617 = vperm.slane %v333, 7
        %619 = vrot.lane.b32.xlu0 %v617, 64
        %v620 = vpop.permute.xlu0 %619
        %v622 = vadd.f32 %v615, %v620
        %v623 = vadd.f32 %v616, %v620
        %v624 = vpack.c.bf16 %v477, %v476
        %v625 = vpack.c.bf16 %v551, %v550
        %v626 = vpack.c.bf16 %v623, %v622
        %628 = vrot.lane.b32.xlu0 %v625, 96
        %v629 = vpop.permute.xlu0 %628
        %vm630 = vcmask 64512
        %v632 = vsel %vm630, %v624, 0
        %v635 = vsel %vm630, %v629, 0
        %637 = vmatpush.bf16.xpose.msra.mxu0 0
        %638 = vmatpush.bf16.xpose.msra.mxu0 0
        %639 = vmatpush.bf16.xpose.msra.mxu0 0
        %640 = vmatpush.bf16.xpose.msra.mxu0 0
        %641 = vmatpush.bf16.xpose.msra.mxu0 0
        %642 = vmatpush.bf16.xpose.msra.mxu0 0
        %643 = vmatpush.bf16.xpose.msra.mxu0 0
        %644 = vmatpush.bf16.xpose.msra.mxu0 %v635
        %645 = vmatmul.bf16.gmra.mxu0 %v632
        %v646 = vpop.f32.mrf.mxu0
        %v647 = vadd.f32 0.0, %v646
        %v648 = vpop.f32.mrf.mxu0
        %v649 = vadd.f32 0.0, %v648
        %650 = vdwg.mxu0
        %vm651 = vcmask 130048
        %v652 = vsel %vm651, %v647, -inf
        %653 = vmax.xlane.f32.xlu0 %v652
        %v654 = vpop.xlane.xlu0 %653
        %v655 = vsel %vm651, %v649, -inf
        %656 = vmax.xlane.f32.xlu0 %v655
        %v657 = vpop.xlane.xlu0 %656
        %v658 = vsub.f32 %v647, %v654
        %v659 = vsub.f32 %v649, %v657
        %v660 = vmul.f32 %v658, 1.442695
        %v661 = vpow.pop %v660
        %v662 = vmul.f32 %v659, 1.442695
        %v663 = vpow.pop %v662
        %v664 = vsel %vm651, %v661, 0.0
        %665 = vadd.xlane.f32.xlu0 %v664
        %v666 = vpop.xlane.xlu0 %665
        %v667 = vsel %vm651, %v663, 0.0
        %668 = vadd.xlane.f32.xlu0 %v667
        %v669 = vpop.xlane.xlu0 %668
        %v670 = vrcp.pop %v666
        %v671 = vrcp.pop %v669
        %v672 = vmul.f32 %v661, %v670
        %v673 = vmul.f32 %v663, %v671
        %v674 = vpack.c.bf16 %v673, %v672
        %676 = vrot.lane.b32.xlu0 %v626, 64
        %v677 = vpop.permute.xlu0 %676
        %v680 = vsel %vm651, %v674, 0
        %682 = vmatpush.bf16.msra.mxu0 0
        %683 = vmatpush.bf16.msra.mxu0 0
        %684 = vmatpush.bf16.msra.mxu0 0
        %685 = vmatpush.bf16.msra.mxu0 0
        %686 = vmatpush.bf16.msra.mxu0 0
        %687 = vmatpush.bf16.msra.mxu0 0
        %688 = vmatpush.bf16.msra.mxu0 0
        %689 = vmatpush.bf16.msra.mxu0 %v677
        %690 = vmatmul.bf16.gmra.mxu0 %v680
        %v691 = vpop.f32.mrf.mxu0
        %v692 = vadd.f32 0.0, %v691
        %v693 = vpop.f32.mrf.mxu0
        %v694 = vadd.f32 0.0, %v693
        %695 = vdwg.mxu0
        %697 = vrot.lane.b32.xlu0 %v624, 120
        %v698 = vpop.permute.xlu0 %697
        %699 = vrot.lane.b32.xlu0 %v625, 88
        %v700 = vpop.permute.xlu0 %699
        %v702 = vsel %vm630, %v698, 0
        %v705 = vsel %vm630, %v700, 0
        %707 = vmatpush.bf16.xpose.msra.mxu0 0
        %708 = vmatpush.bf16.xpose.msra.mxu0 0
        %709 = vmatpush.bf16.xpose.msra.mxu0 0
        %710 = vmatpush.bf16.xpose.msra.mxu0 0
        %711 = vmatpush.bf16.xpose.msra.mxu0 0
        %712 = vmatpush.bf16.xpose.msra.mxu0 0
        %713 = vmatpush.bf16.xpose.msra.mxu0 0
        %714 = vmatpush.bf16.xpose.msra.mxu0 %v705
        %715 = vmatmul.bf16.gmra.mxu0 %v702
        %v716 = vpop.f32.mrf.mxu0
        %v717 = vadd.f32 0.0, %v716
        %v718 = vpop.f32.mrf.mxu0
        %v719 = vadd.f32 0.0, %v718
        %720 = vdwg.mxu0
        %v721 = vsel %vm651, %v717, -inf
        %722 = vmax.xlane.f32.xlu0 %v721
        %v723 = vpop.xlane.xlu0 %722
        %v724 = vsel %vm651, %v719, -inf
        %725 = vmax.xlane.f32.xlu0 %v724
        %v726 = vpop.xlane.xlu0 %725
        %v727 = vsub.f32 %v717, %v723
        %v728 = vsub.f32 %v719, %v726
        %v729 = vmul.f32 %v727, 1.442695
        %v730 = vpow.pop %v729
        %v731 = vmul.f32 %v728, 1.442695
        %v732 = vpow.pop %v731
        %v733 = vsel %vm651, %v730, 0.0
        %734 = vadd.xlane.f32.xlu0 %v733
        %v735 = vpop.xlane.xlu0 %734
        %v736 = vsel %vm651, %v732, 0.0
        %737 = vadd.xlane.f32.xlu0 %v736
        %v738 = vpop.xlane.xlu0 %737
        %v739 = vrcp.pop %v735
        %v740 = vrcp.pop %v738
        %v741 = vmul.f32 %v730, %v739
        %v742 = vmul.f32 %v732, %v740
        %v743 = vpack.c.bf16 %v742, %v741
        %744 = vrot.lane.b32.xlu0 %v626, 56
        %v745 = vpop.permute.xlu0 %744
        %v748 = vsel %vm651, %v743, 0
        %750 = vmatpush.bf16.msra.mxu0 0
        %751 = vmatpush.bf16.msra.mxu0 0
        %752 = vmatpush.bf16.msra.mxu0 0
        %753 = vmatpush.bf16.msra.mxu0 0
        %754 = vmatpush.bf16.msra.mxu0 0
        %755 = vmatpush.bf16.msra.mxu0 0
        %756 = vmatpush.bf16.msra.mxu0 0
        %757 = vmatpush.bf16.msra.mxu0 %v745
        %758 = vmatmul.bf16.gmra.mxu0 %v748
        %v759 = vpop.f32.mrf.mxu0
        %v760 = vadd.f32 0.0, %v759
        %v761 = vpop.f32.mrf.mxu0
        %v762 = vadd.f32 0.0, %v761
        %763 = vdwg.mxu0
        %764 = vrot.lane.b32.xlu0 %v624, 112
        %v765 = vpop.permute.xlu0 %764
        %766 = vrot.lane.b32.xlu0 %v625, 80
        %v767 = vpop.permute.xlu0 %766
        %v769 = vsel %vm630, %v765, 0
        %v772 = vsel %vm630, %v767, 0
        %774 = vmatpush.bf16.xpose.msra.mxu0 0
        %775 = vmatpush.bf16.xpose.msra.mxu0 0
        %776 = vmatpush.bf16.xpose.msra.mxu0 0
        %777 = vmatpush.bf16.xpose.msra.mxu0 0
        %778 = vmatpush.bf16.xpose.msra.mxu0 0
        %779 = vmatpush.bf16.xpose.msra.mxu0 0
        %780 = vmatpush.bf16.xpose.msra.mxu0 0
        %781 = vmatpush.bf16.xpose.msra.mxu0 %v772
        %782 = vmatmul.bf16.gmra.mxu0 %v769
        %v783 = vpop.f32.mrf.mxu0
        %v784 = vadd.f32 0.0, %v783
        %v785 = vpop.f32.mrf.mxu0
        %v786 = vadd.f32 0.0, %v785
        %787 = vdwg.mxu0
        %v788 = vsel %vm651, %v784, -inf
        %789 = vmax.xlane.f32.xlu0 %v788
        %v790 = vpop.xlane.xlu0 %789
        %v791 = vsel %vm651, %v786, -inf
        %792 = vmax.xlane.f32.xlu0 %v791
        %v793 = vpop.xlane.xlu0 %792
        %v794 = vsub.f32 %v784, %v790
        %v795 = vsub.f32 %v786, %v793
        %v796 = vmul.f32 %v794, 1.442695
        %v797 = vpow.pop %v796
        %v798 = vmul.f32 %v795, 1.442695
        %v799 = vpow.pop %v798
        %v800 = vsel %vm651, %v797, 0.0
        %801 = vadd.xlane.f32.xlu0 %v800
        %v802 = vpop.xlane.xlu0 %801
        %v803 = vsel %vm651, %v799, 0.0
        %804 = vadd.xlane.f32.xlu0 %v803
        %v805 = vpop.xlane.xlu0 %804
        %v806 = vrcp.pop %v802
        %v807 = vrcp.pop %v805
        %v808 = vmul.f32 %v797, %v806
        %v809 = vmul.f32 %v799, %v807
        %v810 = vpack.c.bf16 %v809, %v808
        %811 = vrot.lane.b32.xlu0 %v626, 48
        %v812 = vpop.permute.xlu0 %811
        %v815 = vsel %vm651, %v810, 0
        %817 = vmatpush.bf16.msra.mxu0 0
        %818 = vmatpush.bf16.msra.mxu0 0
        %819 = vmatpush.bf16.msra.mxu0 0
        %820 = vmatpush.bf16.msra.mxu0 0
        %821 = vmatpush.bf16.msra.mxu0 0
        %822 = vmatpush.bf16.msra.mxu0 0
        %823 = vmatpush.bf16.msra.mxu0 0
        %824 = vmatpush.bf16.msra.mxu0 %v812
        %825 = vmatmul.bf16.gmra.mxu0 %v815
        %v826 = vpop.f32.mrf.mxu0
        %v827 = vadd.f32 0.0, %v826
        %v828 = vpop.f32.mrf.mxu0
        %v829 = vadd.f32 0.0, %v828
        %830 = vdwg.mxu0
        %831 = vrot.lane.b32.xlu0 %v624, 104
        %v832 = vpop.permute.xlu0 %831
        %833 = vrot.lane.b32.xlu0 %v625, 72
        %v834 = vpop.permute.xlu0 %833
        %v836 = vsel %vm630, %v832, 0
        %v839 = vsel %vm630, %v834, 0
        %841 = vmatpush.bf16.xpose.msra.mxu0 0
        %842 = vmatpush.bf16.xpose.msra.mxu0 0
        %843 = vmatpush.bf16.xpose.msra.mxu0 0
        %844 = vmatpush.bf16.xpose.msra.mxu0 0
        %845 = vmatpush.bf16.xpose.msra.mxu0 0
        %846 = vmatpush.bf16.xpose.msra.mxu0 0
        %847 = vmatpush.bf16.xpose.msra.mxu0 0
        %848 = vmatpush.bf16.xpose.msra.mxu0 %v839
        %849 = vmatmul.bf16.gmra.mxu0 %v836
        %v850 = vpop.f32.mrf.mxu0
        %v851 = vadd.f32 0.0, %v850
        %v852 = vpop.f32.mrf.mxu0
        %v853 = vadd.f32 0.0, %v852
        %854 = vdwg.mxu0
        %v855 = vsel %vm651, %v851, -inf
        %856 = vmax.xlane.f32.xlu0 %v855
        %v857 = vpop.xlane.xlu0 %856
        %v858 = vsel %vm651, %v853, -inf
        %859 = vmax.xlane.f32.xlu0 %v858
        %v860 = vpop.xlane.xlu0 %859
        %v861 = vsub.f32 %v851, %v857
        %v862 = vsub.f32 %v853, %v860
        %v863 = vmul.f32 %v861, 1.442695
        %v864 = vpow.pop %v863
        %v865 = vmul.f32 %v862, 1.442695
        %v866 = vpow.pop %v865
        %v867 = vsel %vm651, %v864, 0.0
        %868 = vadd.xlane.f32.xlu0 %v867
        %v869 = vpop.xlane.xlu0 %868
        %v870 = vsel %vm651, %v866, 0.0
        %871 = vadd.xlane.f32.xlu0 %v870
        %v872 = vpop.xlane.xlu0 %871
        %v873 = vrcp.pop %v869
        %v874 = vrcp.pop %v872
        %v875 = vmul.f32 %v864, %v873
        %v876 = vmul.f32 %v866, %v874
        %v877 = vpack.c.bf16 %v876, %v875
        %878 = vrot.lane.b32.xlu0 %v626, 40
        %v879 = vpop.permute.xlu0 %878
        %v882 = vsel %vm651, %v877, 0
        %884 = vmatpush.bf16.msra.mxu0 0
        %885 = vmatpush.bf16.msra.mxu0 0
        %886 = vmatpush.bf16.msra.mxu0 0
        %887 = vmatpush.bf16.msra.mxu0 0
        %888 = vmatpush.bf16.msra.mxu0 0
        %889 = vmatpush.bf16.msra.mxu0 0
        %890 = vmatpush.bf16.msra.mxu0 0
        %891 = vmatpush.bf16.msra.mxu0 %v879
        %892 = vmatmul.bf16.gmra.mxu0 %v882
        %v893 = vpop.f32.mrf.mxu0
        %v894 = vadd.f32 0.0, %v893
        %v895 = vpop.f32.mrf.mxu0
        %v896 = vadd.f32 0.0, %v895
        %897 = vdwg.mxu0
        %900 = vrot.lane.b32.xlu0 %v760, 8
        %v901 = vpop.permute.xlu0 %900
        %902 = vrot.lane.b32.xlu0 %v762, 8
        %v903 = vpop.permute.xlu0 %902
        %908 = vrot.lane.b32.xlu0 %v827, 16
        %v909 = vpop.permute.xlu0 %908
        %910 = vrot.lane.b32.xlu0 %v829, 16
        %v911 = vpop.permute.xlu0 %910
        %916 = vrot.lane.b32.xlu0 %v894, 24
        %v917 = vpop.permute.xlu0 %916
        %918 = vrot.lane.b32.xlu0 %v896, 24
        %v919 = vpop.permute.xlu0 %918
        %v922 = vsel %vm630, %v692, %v901
        %v923 = vsel %vm630, %v694, %v903
        %v924 = vsel %vm651, %v922, %v909
        %v925 = vsel %vm651, %v923, %v911
        %vm926 = vcmask 195584
        %v927 = vsel %vm926, %v924, %v917
        %v928 = vsel %vm926, %v925, %v919
        %v929 = vpack.c.bf16 %v928, %v927
        %v930 = vld [vmem:[%s2] sm:$0xf]
        %v931 = vld [vmem:[%s2 + $0x4] sm:$0xf]
        %v932 = vld [vmem:[%s2 + $0x8] sm:$0xf]
        %v933 = vld [vmem:[%s2 + $0xc] sm:$0xf]
        %v938 = vunpack.c.l.b16 %v930
        %v939 = vunpack.c.l.b16 %v931
        %v940 = vunpack.c.l.b16 %v932
        %v941 = vunpack.c.l.b16 %v933
        %v942 = vpack.c.b16 %v939, %v938
        %v943 = vpack.c.b16 %v941, %v940
        %v947 = vsel %vm336, %v929, 0
        %949 = vmatpush.bf16.msra.mxu0 0
        %950 = vmatpush.bf16.msra.mxu0 0
        %951 = vmatpush.bf16.msra.mxu0 0
        %952 = vmatpush.bf16.msra.mxu0 0
        %953 = vmatpush.bf16.msra.mxu0 0
        %954 = vmatpush.bf16.msra.mxu0 0
        %955 = vmatpush.bf16.msra.mxu0 %v943
        %956 = vmatpush.bf16.msra.mxu0 %v942
        %957 = vmatmul.bf16.gmra.mxu0 %v947
        %v958 = vpop.f32.mrf.mxu0
        %v959 = vadd.f32 %v331, %v958
        %v960 = vpop.f32.mrf.mxu0
        %v961 = vadd.f32 %v332, %v960
        %962 = vdwg.mxu0
        %v963 = vsel %vm336, %v959, 0.0
        %964 = vadd.xlane.f32.xlu0 %v963
        %v965 = vpop.xlane.xlu0 %964
        %v966 = vsel %vm336, %v961, 0.0
        %967 = vadd.xlane.f32.xlu0 %v966
        %v968 = vpop.xlane.xlu0 %967
        %v969 = vmul.f32 %v965, %v349
        %v970 = vmul.f32 %v968, %v349
        %v971 = vsub.f32 %v959, %v969
        %v972 = vsub.f32 %v961, %v970
        %v973 = vmul.f32 %v971, %v971
        %v974 = vmul.f32 %v972, %v972
        %v975 = vsel %vm336, %v973, 0.0
        %976 = vadd.xlane.f32.xlu0 %v975
        %v977 = vpop.xlane.xlu0 %976
        %v978 = vsel %vm336, %v974, 0.0
        %979 = vadd.xlane.f32.xlu0 %v978
        %v980 = vpop.xlane.xlu0 %979
        %v981 = vmul.f32 %v977, %v349
        %v982 = vmul.f32 %v980, %v349
        %v983 = vadd.f32 %v981, 1e-05
        %v984 = vadd.f32 %v982, 1e-05
        %v985 = vrsqrt.pop %v983
        %v986 = vmul.f32 %v985, %v983
        %v987 = vmul.f32 %v986, %v985
        %v988 = vmul.f32 0.5, %v987
        %v989 = vsub.f32 1.5, %v988
        %v990 = vmul.f32 %v985, %v989
        %vm991 = vweird.f32 %v983
        %vm992 = vweird.f32 %v985
        %vm993 = vmor %vm991, %vm992
        %v994 = vsel %vm993, %v985, %v990
        %v995 = vrsqrt.pop %v984
        %v996 = vmul.f32 %v995, %v984
        %v997 = vmul.f32 %v996, %v995
        %v998 = vmul.f32 0.5, %v997
        %v999 = vsub.f32 1.5, %v998
        %v1000 = vmul.f32 %v995, %v999
        %vm1001 = vweird.f32 %v984
        %vm1002 = vweird.f32 %v995
        %vm1003 = vmor %vm1001, %vm1002
        %v1004 = vsel %vm1003, %v995, %v1000
        %v1005 = vmul.f32 %v971, %v994
        %v1006 = vmul.f32 %v972, %v1004
        %v1007 = vperm.slane %v334, 0
        %v1008 = vmul.f32 %v1005, %v1007
        %v1009 = vmul.f32 %v1006, %v1007
        %v1010 = vperm.slane %v334, 1
        %v1011 = vadd.f32 %v1008, %v1010
        %v1012 = vadd.f32 %v1009, %v1010
        %v1013 = vpack.c.bf16 %v1012, %v1011
        %v1014 = vlaneseq
        %v1015 = vshrl.u32 %v1014, 7
        %v1016 = vadd.s32 %v1015, 8
        %vm1017 = vcmp.ne.s32.totalorder %v1015, 0
        %vm1018 = vcmp.ne.s32.totalorder %v1016, 0
        %v1019 = vsel %vm1017, 1, 0
        %v1020 = vsel %vm1018, 1, 0
        %v1021 = vcvt.s32.f32 %v1019
        %v1022 = vcvt.s32.f32 %v1020
        %vm1023 = vcmp.ne.s32.totalorder %v1015, 15
        %vm1024 = vcmp.ne.s32.totalorder %v1016, 15
        %v1025 = vsel %vm1023, 1, 0
        %v1026 = vsel %vm1024, 1, 0
        %v1027 = vcvt.s32.f32 %v1025
        %v1028 = vcvt.s32.f32 %v1026
        %v1029 = vld [vmem:[%s3] sm:$0xf]
        %v1030 = vld [vmem:[%s3 + $0x4] sm:$0xf]
        %v1031 = vld [vmem:[%s3 + $0x8] sm:$0xf]
        %v1032 = vld [vmem:[%s3 + $0xc] sm:$0xf]
        %v1033 = vperm.slane %v335, 0
        %v1038 = vunpack.c.l.b16 %v1029
        %v1039 = vunpack.c.l.b16 %v1030
        %v1040 = vunpack.c.l.b16 %v1031
        %v1041 = vunpack.c.l.b16 %v1032
        %v1042 = vpack.c.b16 %v1039, %v1038
        %v1043 = vpack.c.b16 %v1041, %v1040
        %v1047 = vsel %vm336, %v1013, 0
        %1049 = vmatpush.bf16.msra.mxu0 0
        %1050 = vmatpush.bf16.msra.mxu0 0
        %1051 = vmatpush.bf16.msra.mxu0 0
        %1052 = vmatpush.bf16.msra.mxu0 0
        %1053 = vmatpush.bf16.msra.mxu0 0
        %1054 = vmatpush.bf16.msra.mxu0 0
        %1055 = vmatpush.bf16.msra.mxu0 %v1043
        %1056 = vmatpush.bf16.msra.mxu0 %v1042
        %1057 = vmatmul.bf16.gmra.mxu0 %v1047
        %v1058 = vpop.f32.mrf.mxu0
        %v1059 = vadd.f32 %v1033, %v1058
        %v1060 = vpop.f32.mrf.mxu0
        %v1061 = vadd.f32 %v1033, %v1060
        %1062 = vdwg.mxu0
        %v1063 = vrot.slane %v1059, 7
        %v1064 = vrot.slane %v1061, 7
        %vm1065 = vcmp.lt.s32.totalorder %v1015, 1
        %v1066 = vsel %vm1065, %v1063, %v1064
        %v1067 = vsel %vm1065, %v1064, %v1063
        %v1068 = vmul.f32 %v1067, %v1021
        %v1069 = vmul.f32 %v1066, %v1022
        %v1070 = vrot.slane %v1059, 1
        %v1071 = vrot.slane %v1061, 1
        %vm1072 = vcmp.lt.s32.totalorder %v1015, 7
        %v1073 = vsel %vm1072, %v1070, %v1071
        %v1074 = vsel %vm1072, %v1071, %v1070
        %v1075 = vmul.f32 %v1073, %v1027
        %v1076 = vmul.f32 %v1074, %v1028
        %v1077 = vperm.slane %v335, 1
        %v1078 = vmul.f32 %v1068, %v1077
        %v1079 = vmul.f32 %v1069, %v1077
        %v1080 = vperm.slane %v335, 2
        %v1081 = vmul.f32 %v1059, %v1080
        %v1082 = vmul.f32 %v1061, %v1080
        %v1083 = vadd.f32 %v1078, %v1081
        %v1084 = vadd.f32 %v1079, %v1082
        %v1085 = vperm.slane %v335, 3
        %v1086 = vmul.f32 %v1075, %v1085
        %v1087 = vmul.f32 %v1076, %v1085
        %v1088 = vadd.f32 %v1083, %v1086
        %v1089 = vadd.f32 %v1084, %v1087
        %v1090 = vperm.slane %v335, 4
        %v1091 = vadd.f32 %v1088, %v1090
        %v1092 = vadd.f32 %v1089, %v1090
        %v1093 = vmul.f32 %v1091, 0.5
        %v1094 = vmul.f32 %v1092, 0.5
        %v1095 = vmul.f32 %v1091, 0.70710677
        %v1096 = vmul.f32 %v1092, 0.70710677
        %v1097 = vmul.f32 %v1095, %v1095
        %v1098 = vmin.f32 16.0, %v1097
        %v1099 = vmul.f32 %v1098, 2.1237322e-06
        %v1100 = vadd.f32 %v1099, 0.00028619796
        %v1101 = vmul.f32 %v1098, %v1100
        %v1102 = vadd.f32 %v1101, 0.0036580483
        %v1103 = vmul.f32 %v1098, %v1102
        %v1104 = vadd.f32 %v1103, 0.05243302
        %v1105 = vmul.f32 %v1098, %v1104
        %v1106 = vadd.f32 %v1105, 0.18741608
        %v1107 = vmul.f32 %v1098, %v1106
        %v1108 = vadd.f32 %v1107, 1.1283791
        %v1109 = vmul.f32 %v1095, %v1108
        %v1110 = vmul.f32 %v1098, 3.8918573e-05
        %v1111 = vadd.f32 %v1110, 0.001143296
        %v1112 = vmul.f32 %v1098, %v1111
        %v1113 = vadd.f32 %v1112, 0.014752088
        %v1114 = vmul.f32 %v1098, %v1113
        %v1115 = vadd.f32 %v1114, 0.112945676
        %v1116 = vmul.f32 %v1098, %v1115
        %v1117 = vadd.f32 %v1116, 0.4994258
        %v1118 = vmul.f32 %v1098, %v1117
        %v1119 = vadd.f32 %v1118, 1.0
        %v1120 = vrcp.pop %v1119
        %v1121 = vmul.f32 %v1119, %v1120
        %v1122 = vsub.f32 1.0, %v1121
        %v1123 = vmul.f32 %v1120, %v1122
        %v1124 = vadd.f32 %v1120, %v1123
        %vm1125 = vweird.f32 %v1119
        %vm1126 = vweird.f32 %v1120
        %vm1127 = vmor %vm1125, %vm1126
        %v1128 = vsel %vm1127, %v1120, %v1124
        %v1129 = vand.u32 2147483647, %v1119
        %vm1130 = vcmp.eq.f32.partialorder %v1129, 8.507059e+37
        %v1131 = vand.u32 %v1119, 2147483648
        %v1132 = vor.u32 1.1754944e-38, %v1131
        %v1133 = vsel %vm1130, %v1132, %v1128
        %v1134 = vmul.f32 %v1109, %v1133
        %v1135 = vmin.f32 %v1134, 1.0
        %v1136 = vmax.f32 %v1135, -1.0
        %v1137 = vmul.f32 %v1096, %v1096
        %v1138 = vmin.f32 16.0, %v1137
        %v1139 = vmul.f32 %v1138, 2.1237322e-06
        %v1140 = vadd.f32 %v1139, 0.00028619796
        %v1141 = vmul.f32 %v1138, %v1140
        %v1142 = vadd.f32 %v1141, 0.0036580483
        %v1143 = vmul.f32 %v1138, %v1142
        %v1144 = vadd.f32 %v1143, 0.05243302
        %v1145 = vmul.f32 %v1138, %v1144
        %v1146 = vadd.f32 %v1145, 0.18741608
        %v1147 = vmul.f32 %v1138, %v1146
        %v1148 = vadd.f32 %v1147, 1.1283791
        %v1149 = vmul.f32 %v1096, %v1148
        %v1150 = vmul.f32 %v1138, 3.8918573e-05
        %v1151 = vadd.f32 %v1150, 0.001143296
        %v1152 = vmul.f32 %v1138, %v1151
        %v1153 = vadd.f32 %v1152, 0.014752088
        %v1154 = vmul.f32 %v1138, %v1153
        %v1155 = vadd.f32 %v1154, 0.112945676
        %v1156 = vmul.f32 %v1138, %v1155
        %v1157 = vadd.f32 %v1156, 0.4994258
        %v1158 = vmul.f32 %v1138, %v1157
        %v1159 = vadd.f32 %v1158, 1.0
        %v1160 = vrcp.pop %v1159
        %v1161 = vmul.f32 %v1159, %v1160
        %v1162 = vsub.f32 1.0, %v1161
        %v1163 = vmul.f32 %v1160, %v1162
        %v1164 = vadd.f32 %v1160, %v1163
        %vm1165 = vweird.f32 %v1159
        %vm1166 = vweird.f32 %v1160
        %vm1167 = vmor %vm1165, %vm1166
        %v1168 = vsel %vm1167, %v1160, %v1164
        %v1169 = vand.u32 2147483647, %v1159
        %vm1170 = vcmp.eq.f32.partialorder %v1169, 8.507059e+37
        %v1171 = vand.u32 %v1159, 2147483648
        %v1172 = vor.u32 1.1754944e-38, %v1171
        %v1173 = vsel %vm1170, %v1172, %v1168
        %v1174 = vmul.f32 %v1149, %v1173
        %v1175 = vmin.f32 %v1174, 1.0
        %v1176 = vmax.f32 %v1175, -1.0
        %v1177 = vadd.f32 %v1136, 1.0
        %v1178 = vadd.f32 %v1176, 1.0
        %v1179 = vmul.f32 %v1093, %v1177
        %v1180 = vmul.f32 %v1094, %v1178
        %v1181 = vpack.c.bf16 %v1180, %v1179
        %v1182 = vld [vmem:[%s4] sm:$0xf]
        %v1183 = vld [vmem:[%s4 + $0x4] sm:$0xf]
        %v1184 = vld [vmem:[%s4 + $0x8] sm:$0xf]
        %v1185 = vld [vmem:[%s4 + $0xc] sm:$0xf]
        %v1186 = vld [vmem:[%s4 + $0x10] sm:$0xf]
        %v1187 = vld [vmem:[%s4 + $0x14] sm:$0xf]
        %v1188 = vld [vmem:[%s4 + $0x18] sm:$0xf]
        %v1189 = vld [vmem:[%s4 + $0x1c] sm:$0xf]
        %v1190 = vperm.slane %v334, 2
        %v1199 = vunpack.c.l.b16 %v1182
        %v1200 = vunpack.c.l.b16 %v1183
        %v1201 = vunpack.c.l.b16 %v1184
        %v1202 = vunpack.c.l.b16 %v1185
        %v1203 = vunpack.c.l.b16 %v1186
        %v1204 = vunpack.c.l.b16 %v1187
        %v1205 = vunpack.c.l.b16 %v1188
        %v1206 = vunpack.c.l.b16 %v1189
        %v1207 = vpack.c.b16 %v1200, %v1199
        %v1208 = vpack.c.b16 %v1202, %v1201
        %v1209 = vpack.c.b16 %v1204, %v1203
        %v1210 = vpack.c.b16 %v1206, %v1205
        %vm1215 = vcmask 523264
        %v1217 = vsel %vm1215, %v1181, 0
        %1219 = vmatpush.bf16.msra.mxu0 0
        %1220 = vmatpush.bf16.msra.mxu0 0
        %1221 = vmatpush.bf16.msra.mxu0 0
        %1222 = vmatpush.bf16.msra.mxu0 0
        %1223 = vmatpush.bf16.msra.mxu0 %v1210
        %1224 = vmatpush.bf16.msra.mxu0 %v1209
        %1225 = vmatpush.bf16.msra.mxu0 %v1208
        %1226 = vmatpush.bf16.msra.mxu0 %v1207
        %1227 = vmatmul.bf16.gmra.mxu0 %v1217
        %v1228 = vpop.f32.mrf.mxu0
        %v1229 = vadd.f32 %v1190, %v1228
        %v1230 = vpop.f32.mrf.mxu0
        %v1231 = vadd.f32 %v1190, %v1230
        %1232 = vdwg.mxu0
        %v1233 = vadd.f32 %v1229, %v959
        %v1234 = vadd.f32 %v1231, %v961
        %1235 = vst.msk [vmem:[%s329] sm:$0xff] %vm336, %v1233
        %1236 = vst.msk [vmem:[%s329 + $0x8] sm:$0xff] %vm336, %v1234
        %s1237 = sand.u32 %s185, 1
        %s1238 = scalar_lea.sflag [#allocation4], %s1237
        %s1239 = sand.u32 %s185, 1
        %s1240 = smul.addr %s1239, 16
        %s1241 = scalar_lea.vmem [#allocation8], %s1240
        // Predicated region
        $region61: #{tpu_custom_call.1} parent=47 // pred_check
          %p1242 = pneg %p195
        $region62: #{tpu_custom_call.1} parent=47 // pred_check_branch
          %1244 = sbr.rel (%p1242) target = $region64
        $region63: #{tpu_custom_call.1} parent=47 // pred_region
          %1246 = vsyncadd %s1238, 0
          %s1247 = smul.addr %s25, 2
          %s1248 = smul.addr %s1247, 8
          %s1249 = scalar_lea.hbm %s7, %s1248
          %s1250 = sshll.u32 %s1241, 4
          %s1251 = int_to_ptr.vmem [resolvable:$true] %s1250
          %s1252 = sshll.u32 %s1249, 4
          %s1253 = int_to_ptr.hbm [resolvable:$true] %s1252
          %1258 = dma.vmem_to_hbm [thread:$0]  %s1251, 256, %s1253, %s1238, 128, 128, 8
        $region64: #{tpu_custom_call.1} parent=47 // pred_fallthru
          _
      $region48: #{tpu_custom_call.1} parent=5 // pred_fallthru
        _
      %p1259 = scmp.le.s32.totalorder 2, %s20
      // Predicated region
      $region65: #{tpu_custom_call.1} parent=5 // pred_check
        %p1260 = pneg %p1259
      $region66: #{tpu_custom_call.1} parent=5 // pred_check_branch
        %1262 = sbr.rel (%p1260) target = $region68
      $region67: #{tpu_custom_call.1} parent=5 // pred_region
        %s1263 = ssub.s32 %s20, 2
        // Predicated region
        $region69: #{tpu_custom_call.1} parent=67 // pred_check
          %p1264 = pneg %p201
        $region70: #{tpu_custom_call.1} parent=67 // pred_check_branch
          %1266 = sbr.rel (%p1264) target = $region72
        $region71: #{tpu_custom_call.1} parent=67 // pred_region
          %s1267 = sand.u32 %s186, 1
          %s1268 = scalar_lea.sflag [#allocation4], %s1267
          %s1269 = sand.u32 %s186, 1
          %s1270 = smul.addr %s1269, 16
          %s1271 = scalar_lea.vmem [#allocation8], %s1270
          %1273 = dma.done %s1268, 256
        $region72: #{tpu_custom_call.1} parent=67 // pred_fallthru
          _
      $region68: #{tpu_custom_call.1} parent=5 // pred_fallthru
        _
    $region6: #{tpu_custom_call.1} parent=1 // loop_footer
      %s24 = sadd.s32 1, %s20
    $region7: #{tpu_custom_call.1} parent=1 // loop_footer_branch
      %19 = sbr.rel target = $region3
    $region8: #{tpu_custom_call.1} parent=1 // loop_exit
      _
    %1274 = vsyncpa [#allocation3], 1
    %s1275 = scalar_lea.sflag [#allocation3], 1
    %1276 = vsyncpa %s1275, 1
    %1277 = vsyncpa [#allocation6], 1
    %1278 = vsyncpa [#allocation4], 1
    %s1279 = scalar_lea.sflag [#allocation4], 1
    %1280 = vsyncpa %s1279, 1

</llo_original>
